<compile_context>
chip_gen: v7x
topology: tpu7x:2x2x1
jax: 0.10.0
libtpu: 0.0.40
codegen_flags: <defaults>
</compile_context>

<pallas_src>
import functools

import jax
import jax.numpy as jnp
from jax import lax
from jax.experimental import pallas as pl
from jax.experimental.pallas import tpu as pltpu


def _rpn_head_kernel(x_ref, w9_ref, b1_ref, wh_ref, bh_ref, out_ref, *, TH, W):
    """One (batch image, row tile) step of the RPN head.

    x_ref  : ((TH+2)*W + 2, Cin) bf16 -- haloed, zero-bordered window; interior starts at W+1
    w9_ref : (9, Cin, Cmid)      bf16 -- 3x3 conv weights, tap index = dy*3 + dx
    b1_ref : (1, Cmid)           f32  -- 3x3 conv bias
    wh_ref : (Cmid, Cpad)        bf16 -- fused [score | loc | zero-pad] 1x1 weights (Cpad%128==0)
    bh_ref : (1, Cpad)           f32  -- fused biases (zero in padded lanes)
    out_ref: (TH*W, Cpad)        bf16 -- lane-dense raw head outputs for this tile
    """
    rows = TH * W
    OFF = W + 1                      # window index of image element (tile_row 0, col 0)
    Cmid = w9_ref.shape[-1]

    def tap(dy, dx):
        s = OFF + (dy - 1) * W + (dx - 1)          # static sublane-range slice of the ref
        return jnp.dot(x_ref[s:s + rows, :], w9_ref[dy * 3 + dx],
                       preferred_element_type=jnp.float32)

    # Column-validity masks for the horizontal taps.  Vertical out-of-image taps read the
    # genuine zero halo rows built by the wrapper and need no mask.
    col = lax.broadcasted_iota(jnp.int32, (rows, 1), 0) % W
    left_ok = col >= 1               # dx == 0 reads column x - 1
    right_ok = col <= W - 2          # dx == 2 reads column x + 1

    # 3x3 conv as 9 shifted matmuls, f32 accumulation, bias folded into the acc init.
    acc = jnp.broadcast_to(b1_ref[...].astype(jnp.float32), (rows, Cmid))
    # center-column taps: always valid.
    acc = acc + tap(0, 1) + tap(1, 1) + tap(2, 1)
    # left-column taps: sum the group, mask the (rows, Cmid) result once.
    acc_l = tap(0, 0) + tap(1, 0) + tap(2, 0)
    acc = acc + jnp.where(left_ok, acc_l, 0.0)
    # right-column taps: same.
    acc_r = tap(0, 2) + tap(1, 2) + tap(2, 2)
    acc = acc + jnp.where(right_ok, acc_r, 0.0)

    h = jnp.maximum(acc, 0.0).astype(jnp.bfloat16)          # ReLU, bf16 for the head MXU push

    # Fused score + loc 1x1 convs: one MXU push into the 128-lane-padded slab.
    head = jnp.dot(h, wh_ref[...], preferred_element_type=jnp.float32) + bh_ref[...]
    out_ref[...] = head.astype(out_ref.dtype)


def _round_up(x, m):
    return ((x + m - 1) // m) * m


def _choose_row_tile(H, W):
    """Largest divisor TH of H with TH*W <= ~2048 flattened rows (a few MB/step at Cin=256)."""
    target = 2048
    best = 1
    for d in range(1, H + 1):
        if H % d == 0 and d * W <= target:
            best = d
    return best


def _vmem_limit_bytes():
    """Generation-aware scoped-VMEM limit with ~25% headroom (v7x: ~48 MiB, v5e/v6e: ~96 MiB)."""
    try:
        cap = int(pltpu.get_tpu_info().vmem_capacity_bytes)
        limit = (cap * 3) // 4
    except Exception:
        limit = 48 * 1024 * 1024
    return max(32 * 1024 * 1024, min(limit, 100 * 1024 * 1024))


@functools.partial(jax.jit, static_argnames=("row_tile",))
def rpn_head_forward(x_nchw, params, row_tile=None):
    """RPNHead forward. Returns (rpn_scores, rpn_boxes, raw_rpn_scores, raw_rpn_boxes)
    with the same shapes/semantics as the PyTorch module (f32 outputs)."""
    w1, b1, ws, bs, wl, bl = params
    B, Cin, H, W = x_nchw.shape
    Cmid = w1.shape[-1]
    A = ws.shape[-1]
    HW = H * W

    # Row-tile size (must divide H).
    if row_tile is None:
        TH = _choose_row_tile(H, W)
    else:
        TH = max(d for d in range(1, int(row_tile) + 1) if H % d == 0)
    T = H // TH
    rows = TH * W
    R2 = (TH + 2) * W + 2            # tile rows + 1 halo row above/below + 1 guard elem each end

    # Build zero-bordered, haloed bf16 row-tile windows in one fused pass with the
    # NCHW->NHWC layout change (read x once, write ~(1+2/TH)x the elements in half-width bf16).
    x_nhwc = jnp.transpose(x_nchw, (0, 2, 3, 1)).astype(jnp.bfloat16)      # (B, H, W, Cin)
    x_pad = jnp.pad(x_nhwc, ((0, 0), (1, 1), (0, 0), (0, 0)))              # zero row top/bottom
    x_flat = x_pad.reshape(B, (H + 2) * W, Cin)
    x_flat = jnp.pad(x_flat, ((0, 0), (1, 1), (0, 0)))                     # 1-elem guards
    x_win = jnp.stack([x_flat[:, t * TH * W: t * TH * W + R2] for t in range(T)],
                      axis=1)                                              # (B, T, R2, Cin)

    # Weights: 3x3 conv as (9, Cin, Cmid); heads fused and zero-padded to a lane-dense width.
    w9 = w1.astype(jnp.bfloat16).reshape(9, Cin, Cmid)
    b1r = b1.astype(jnp.float32).reshape(1, Cmid)
    cout = 5 * A
    cout_pad = _round_up(cout, 128)
    wh = jnp.pad(jnp.concatenate([ws, wl], axis=1).astype(jnp.bfloat16),
                 ((0, 0), (0, cout_pad - cout)))
    bh = jnp.pad(jnp.concatenate([bs, bl], axis=1).astype(jnp.float32),
                 ((0, 0), (0, cout_pad - cout)))

    kernel = functools.partial(_rpn_head_kernel, TH=TH, W=W)

    grid_spec = pltpu.PrefetchScalarGridSpec(
        num_scalar_prefetch=0,
        grid=(B, T),
        in_specs=[
            pl.BlockSpec((None, None, R2, Cin), lambda b, t: (b, t, 0, 0)),
            pl.BlockSpec((9, Cin, Cmid), lambda b, t: (0, 0, 0)),
            pl.BlockSpec((1, Cmid), lambda b, t: (0, 0)),
            pl.BlockSpec((Cmid, cout_pad), lambda b, t: (0, 0)),
            pl.BlockSpec((1, cout_pad), lambda b, t: (0, 0)),
        ],
        out_specs=pl.BlockSpec((None, None, rows, cout_pad), lambda b, t: (b, t, 0, 0)),
    )

    slab = pl.pallas_call(
        kernel,
        out_shape=jax.ShapeDtypeStruct((B, T, rows, cout_pad), jnp.bfloat16),
        grid_spec=grid_spec,
        compiler_params=pltpu.CompilerParams(
            dimension_semantics=("parallel", "parallel"),
            vmem_limit_bytes=_vmem_limit_bytes(),
        ),
    )(x_win, w9, b1r, wh, bh)

    # Slice the lane-padded bf16 slab; upcast + sigmoid in the wrapper.  Tiles are row-major,
    # so this matches PyTorch's permute(0,2,3,1).reshape(b,-1,{1,4}) exactly.
    slab = slab.reshape(B, HW, cout_pad)
    raw_rpn_scores = slab[:, :, :A].astype(jnp.float32).reshape(B, HW * A, 1)
    raw_rpn_boxes = slab[:, :, A:cout].astype(jnp.float32).reshape(B, HW * A, 4)
    rpn_scores = jax.nn.sigmoid(raw_rpn_scores)
    rpn_boxes = raw_rpn_boxes  # detach() is a numeric no-op: same array, no extra copy.
    return rpn_scores, rpn_boxes, raw_rpn_scores, raw_rpn_boxes


def _reference_forward(x_nchw, params):
    """Pure-JAX f32 reference (lax.conv) for correctness checking."""
    w1, b1, ws, bs, wl, bl = params
    B, Cin, H, W = x_nchw.shape
    x_nhwc = jnp.transpose(x_nchw, (0, 2, 3, 1)).astype(jnp.float32)
    h = lax.conv_general_dilated(
        x_nhwc, w1.astype(jnp.float32), window_strides=(1, 1), padding="SAME",
        dimension_numbers=("NHWC", "HWIO", "NHWC"))
    h = jnp.maximum(h + b1.reshape(1, 1, 1, -1), 0.0)
    raw_s = jnp.einsum("bhwc,ca->bhwa", h, ws) + bs.reshape(1, 1, 1, -1)
    raw_b = jnp.einsum("bhwc,ca->bhwa", h, wl) + bl.reshape(1, 1, 1, -1)
    raw_rpn_scores = raw_s.reshape(B, -1, 1)
    raw_rpn_boxes = raw_b.reshape(B, -1, 4)
    rpn_scores = jax.nn.sigmoid(raw_rpn_scores)
    return rpn_scores, raw_rpn_boxes, raw_rpn_scores, raw_rpn_boxes


def init_params(key, in_channels, channels, anchor_depth):
    """Deterministic synthetic weights (kernel layouts: HWIO / (Cin, Cout))."""
    k1, k2, k3, k4, k5, k6 = jax.random.split(key, 6)
    w1 = jax.random.normal(k1, (3, 3, in_channels, channels), jnp.float32) * 0.1
    b1 = jax.random.normal(k2, (1, channels), jnp.float32) * 0.1
    ws = jax.random.normal(k3, (channels, anchor_depth), jnp.float32) * 0.1
    bs = jax.random.normal(k4, (1, anchor_depth), jnp.float32) * 0.1
    wl = jax.random.normal(k5, (channels, anchor_depth * 4), jnp.float32) * 0.1
    bl = jax.random.normal(k6, (1, anchor_depth * 4), jnp.float32) * 0.1
    return (w1, b1, ws, bs, wl, bl)


if __name__ == "__main__":
    B, Cin, H, W = 2, 4, 16, 16
    channels, anchor_depth = 32, 3

    key = jax.random.PRNGKey(0)
    kx, kp = jax.random.split(key)
    x = jax.random.normal(kx, (B, Cin, H, W), jnp.float32)
    params = init_params(kp, Cin, channels, anchor_depth)

    refs = _reference_forward(x, params)

    # Exercise both the multi-row-tile path (T=2) and the auto single-tile path.
    for rt in (8, None):
        outs = jax.block_until_ready(rpn_head_forward(x, params, row_tile=rt))
        for o, r in zip(outs, refs):
            assert o.shape == r.shape, (o.shape, r.shape)
            # bf16 MXU operands + bf16 output slab => ~1e-3 abs error at these magnitudes.
            assert jnp.allclose(o, r, atol=2e-2, rtol=2e-2), float(jnp.max(jnp.abs(o - r)))

    print("KERNEL_OK")
</pallas_src>

<mosaic_0001>
module attributes {stable_mosaic.version = 11 : i64} {
  func.func @_rpn_head_kernel(%arg0: i32, %arg1: i32, %arg2: memref<1x1x162x4xbf16, #tpu.memory_space<vmem>>, %arg3: memref<9x4x32xbf16, #tpu.memory_space<vmem>>, %arg4: memref<1x32xf32, #tpu.memory_space<vmem>>, %arg5: memref<32x128xbf16, #tpu.memory_space<vmem>>, %arg6: memref<1x128xf32, #tpu.memory_space<vmem>>, %arg7: memref<1x1x128x128xbf16, #tpu.memory_space<vmem>>) attributes {dimension_semantics = [#tpu.dimension_semantics<parallel>, #tpu.dimension_semantics<parallel>], iteration_bounds = array<i64: 2, 2>, scalar_prefetch = 0 : i64, scratch_operands = 0 : i64, tpu.core_type = #tpu.core_type<tc>, window_params = [{transform_indices = @transform_0, window_bounds = array<i64: 1, 1, 162, 4>}, {pipeline_mode = #tpu.pipeline_mode<synchronous>, transform_indices = @transform_1, window_bounds = array<i64: 9, 4, 32>}, {pipeline_mode = #tpu.pipeline_mode<synchronous>, transform_indices = @transform_2, window_bounds = array<i64: 1, 32>}, {pipeline_mode = #tpu.pipeline_mode<synchronous>, transform_indices = @transform_3, window_bounds = array<i64: 32, 128>}, {pipeline_mode = #tpu.pipeline_mode<synchronous>, transform_indices = @transform_4, window_bounds = array<i64: 1, 128>}, {transform_indices = @transform_5, window_bounds = array<i64: 1, 1, 128, 128>}]} {
    %0 = tpu.iota {dimensions = array<i32: 0>} : vector<128x1xi32>
    %c16_i32 = arith.constant 16 : i32
    %c0_i32 = arith.constant 0 : i32
    %1 = arith.cmpi eq, %c16_i32, %c0_i32 : i32
    %c1_i32 = arith.constant 1 : i32
    %2 = arith.select %1, %c1_i32, %c16_i32 : i32
    %3 = vector.broadcast %2 : i32 to vector<128x1xi32>
    %4 = arith.remsi %0, %3 : vector<128x1xi32>
    %c0_i32_0 = arith.constant 0 : i32
    %5 = vector.broadcast %c0_i32_0 : i32 to vector<128x1xi32>
    %6 = arith.cmpi ne, %4, %5 : vector<128x1xi32>
    %c0_i32_1 = arith.constant 0 : i32
    %7 = vector.broadcast %c0_i32_1 : i32 to vector<128x1xi32>
    %8 = arith.cmpi slt, %4, %7 : vector<128x1xi32>
    %c0_i32_2 = arith.constant 0 : i32
    %9 = arith.cmpi slt, %2, %c0_i32_2 : i32
    %10 = vector.broadcast %9 : i1 to vector<128x1xi1>
    %11 = vector.broadcast %10 : vector<128x1xi1> to vector<128x1xi1>
    %12 = arith.xori %8, %11 : vector<128x1xi1>
    %13 = arith.andi %12, %6 : vector<128x1xi1>
    %14 = vector.broadcast %2 : i32 to vector<128x1xi32>
    %15 = arith.addi %4, %14 : vector<128x1xi32>
    %16 = arith.select %13, %15, %4 : vector<128x1xi1>, vector<128x1xi32>
    %c1_i32_3 = arith.constant 1 : i32
    %17 = vector.broadcast %c1_i32_3 : i32 to vector<128x1xi32>
    %18 = arith.cmpi sge, %16, %17 : vector<128x1xi32>
    %c14_i32 = arith.constant 14 : i32
    %19 = vector.broadcast %c14_i32 : i32 to vector<128x1xi32>
    %20 = arith.cmpi sle, %16, %19 : vector<128x1xi32>
    %c0 = arith.constant 0 : index
    %c0_4 = arith.constant 0 : index
    %21 = vector.load %arg4[%c0, %c0_4] : memref<1x32xf32, #tpu.memory_space<vmem>>, vector<1x32xf32>
    %22 = vector.shape_cast %21 : vector<1x32xf32> to vector<1x32xf32>
    %23 = vector.broadcast %22 : vector<1x32xf32> to vector<128x32xf32>
    %c0_5 = arith.constant 0 : index
    %c0_6 = arith.constant 0 : index
    %c1 = arith.constant 1 : index
    %c0_7 = arith.constant 0 : index
    %24 = vector.load %arg2[%c0_5, %c0_6, %c1, %c0_7] : memref<1x1x162x4xbf16, #tpu.memory_space<vmem>>, vector<1x1x128x4xbf16>
    %25 = vector.shape_cast %24 : vector<1x1x128x4xbf16> to vector<128x4xbf16>
    %c1_8 = arith.constant 1 : index
    %c0_9 = arith.constant 0 : index
    %c0_10 = arith.constant 0 : index
    %26 = vector.load %arg3[%c1_8, %c0_9, %c0_10] : memref<9x4x32xbf16, #tpu.memory_space<vmem>>, vector<1x4x32xbf16>
    %27 = vector.shape_cast %26 : vector<1x4x32xbf16> to vector<4x32xbf16>
    %cst = arith.constant dense<0.000000e+00> : vector<128x32xf32>
    %28 = tpu.matmul %25, %27, %cst {dimension_numbers = #tpu.dot_dimension_numbers<[1], [0], [0], [1], [0, 0, 1, 1], [], []>} : vector<128x4xbf16>, vector<4x32xbf16>, vector<128x32xf32> -> vector<128x32xf32>
    %29 = arith.addf %23, %28 : vector<128x32xf32>
    %c0_11 = arith.constant 0 : index
    %c0_12 = arith.constant 0 : index
    %c17 = arith.constant 17 : index
    %c0_13 = arith.constant 0 : index
    %30 = vector.load %arg2[%c0_11, %c0_12, %c17, %c0_13] : memref<1x1x162x4xbf16, #tpu.memory_space<vmem>>, vector<1x1x128x4xbf16>
    %31 = vector.shape_cast %30 : vector<1x1x128x4xbf16> to vector<128x4xbf16>
    %c4 = arith.constant 4 : index
    %c0_14 = arith.constant 0 : index
    %c0_15 = arith.constant 0 : index
    %32 = vector.load %arg3[%c4, %c0_14, %c0_15] : memref<9x4x32xbf16, #tpu.memory_space<vmem>>, vector<1x4x32xbf16>
    %33 = vector.shape_cast %32 : vector<1x4x32xbf16> to vector<4x32xbf16>
    %cst_16 = arith.constant dense<0.000000e+00> : vector<128x32xf32>
    %34 = tpu.matmul %31, %33, %cst_16 {dimension_numbers = #tpu.dot_dimension_numbers<[1], [0], [0], [1], [0, 0, 1, 1], [], []>} : vector<128x4xbf16>, vector<4x32xbf16>, vector<128x32xf32> -> vector<128x32xf32>
    %35 = arith.addf %29, %34 : vector<128x32xf32>
    %c0_17 = arith.constant 0 : index
    %c0_18 = arith.constant 0 : index
    %c33 = arith.constant 33 : index
    %c0_19 = arith.constant 0 : index
    %36 = vector.load %arg2[%c0_17, %c0_18, %c33, %c0_19] : memref<1x1x162x4xbf16, #tpu.memory_space<vmem>>, vector<1x1x128x4xbf16>
    %37 = vector.shape_cast %36 : vector<1x1x128x4xbf16> to vector<128x4xbf16>
    %c7 = arith.constant 7 : index
    %c0_20 = arith.constant 0 : index
    %c0_21 = arith.constant 0 : index
    %38 = vector.load %arg3[%c7, %c0_20, %c0_21] : memref<9x4x32xbf16, #tpu.memory_space<vmem>>, vector<1x4x32xbf16>
    %39 = vector.shape_cast %38 : vector<1x4x32xbf16> to vector<4x32xbf16>
    %cst_22 = arith.constant dense<0.000000e+00> : vector<128x32xf32>
    %40 = tpu.matmul %37, %39, %cst_22 {dimension_numbers = #tpu.dot_dimension_numbers<[1], [0], [0], [1], [0, 0, 1, 1], [], []>} : vector<128x4xbf16>, vector<4x32xbf16>, vector<128x32xf32> -> vector<128x32xf32>
    %41 = arith.addf %35, %40 : vector<128x32xf32>
    %c0_23 = arith.constant 0 : index
    %c0_24 = arith.constant 0 : index
    %c0_25 = arith.constant 0 : index
    %c0_26 = arith.constant 0 : index
    %42 = vector.load %arg2[%c0_23, %c0_24, %c0_25, %c0_26] : memref<1x1x162x4xbf16, #tpu.memory_space<vmem>>, vector<1x1x128x4xbf16>
    %43 = vector.shape_cast %42 : vector<1x1x128x4xbf16> to vector<128x4xbf16>
    %c0_27 = arith.constant 0 : index
    %c0_28 = arith.constant 0 : index
    %c0_29 = arith.constant 0 : index
    %44 = vector.load %arg3[%c0_27, %c0_28, %c0_29] : memref<9x4x32xbf16, #tpu.memory_space<vmem>>, vector<1x4x32xbf16>
    %45 = vector.shape_cast %44 : vector<1x4x32xbf16> to vector<4x32xbf16>
    %cst_30 = arith.constant dense<0.000000e+00> : vector<128x32xf32>
    %46 = tpu.matmul %43, %45, %cst_30 {dimension_numbers = #tpu.dot_dimension_numbers<[1], [0], [0], [1], [0, 0, 1, 1], [], []>} : vector<128x4xbf16>, vector<4x32xbf16>, vector<128x32xf32> -> vector<128x32xf32>
    %c0_31 = arith.constant 0 : index
    %c0_32 = arith.constant 0 : index
    %c16 = arith.constant 16 : index
    %c0_33 = arith.constant 0 : index
    %47 = vector.load %arg2[%c0_31, %c0_32, %c16, %c0_33] : memref<1x1x162x4xbf16, #tpu.memory_space<vmem>>, vector<1x1x128x4xbf16>
    %48 = vector.shape_cast %47 : vector<1x1x128x4xbf16> to vector<128x4xbf16>
    %c3 = arith.constant 3 : index
    %c0_34 = arith.constant 0 : index
    %c0_35 = arith.constant 0 : index
    %49 = vector.load %arg3[%c3, %c0_34, %c0_35] : memref<9x4x32xbf16, #tpu.memory_space<vmem>>, vector<1x4x32xbf16>
    %50 = vector.shape_cast %49 : vector<1x4x32xbf16> to vector<4x32xbf16>
    %cst_36 = arith.constant dense<0.000000e+00> : vector<128x32xf32>
    %51 = tpu.matmul %48, %50, %cst_36 {dimension_numbers = #tpu.dot_dimension_numbers<[1], [0], [0], [1], [0, 0, 1, 1], [], []>} : vector<128x4xbf16>, vector<4x32xbf16>, vector<128x32xf32> -> vector<128x32xf32>
    %52 = arith.addf %46, %51 : vector<128x32xf32>
    %c0_37 = arith.constant 0 : index
    %c0_38 = arith.constant 0 : index
    %c32 = arith.constant 32 : index
    %c0_39 = arith.constant 0 : index
    %53 = vector.load %arg2[%c0_37, %c0_38, %c32, %c0_39] : memref<1x1x162x4xbf16, #tpu.memory_space<vmem>>, vector<1x1x128x4xbf16>
    %54 = vector.shape_cast %53 : vector<1x1x128x4xbf16> to vector<128x4xbf16>
    %c6 = arith.constant 6 : index
    %c0_40 = arith.constant 0 : index
    %c0_41 = arith.constant 0 : index
    %55 = vector.load %arg3[%c6, %c0_40, %c0_41] : memref<9x4x32xbf16, #tpu.memory_space<vmem>>, vector<1x4x32xbf16>
    %56 = vector.shape_cast %55 : vector<1x4x32xbf16> to vector<4x32xbf16>
    %cst_42 = arith.constant dense<0.000000e+00> : vector<128x32xf32>
    %57 = tpu.matmul %54, %56, %cst_42 {dimension_numbers = #tpu.dot_dimension_numbers<[1], [0], [0], [1], [0, 0, 1, 1], [], []>} : vector<128x4xbf16>, vector<4x32xbf16>, vector<128x32xf32> -> vector<128x32xf32>
    %58 = arith.addf %52, %57 : vector<128x32xf32>
    %cst_43 = arith.constant 0.000000e+00 : f32
    %59 = vector.shape_cast %18 : vector<128x1xi1> to vector<128x1xi1>
    %60 = vector.broadcast %59 : vector<128x1xi1> to vector<128x32xi1>
    %61 = vector.broadcast %cst_43 : f32 to vector<128x32xf32>
    %62 = arith.select %60, %58, %61 : vector<128x32xi1>, vector<128x32xf32>
    %63 = arith.addf %41, %62 : vector<128x32xf32>
    %c0_44 = arith.constant 0 : index
    %c0_45 = arith.constant 0 : index
    %c2 = arith.constant 2 : index
    %c0_46 = arith.constant 0 : index
    %64 = vector.load %arg2[%c0_44, %c0_45, %c2, %c0_46] : memref<1x1x162x4xbf16, #tpu.memory_space<vmem>>, vector<1x1x128x4xbf16>
    %65 = vector.shape_cast %64 : vector<1x1x128x4xbf16> to vector<128x4xbf16>
    %c2_47 = arith.constant 2 : index
    %c0_48 = arith.constant 0 : index
    %c0_49 = arith.constant 0 : index
    %66 = vector.load %arg3[%c2_47, %c0_48, %c0_49] : memref<9x4x32xbf16, #tpu.memory_space<vmem>>, vector<1x4x32xbf16>
    %67 = vector.shape_cast %66 : vector<1x4x32xbf16> to vector<4x32xbf16>
    %cst_50 = arith.constant dense<0.000000e+00> : vector<128x32xf32>
    %68 = tpu.matmul %65, %67, %cst_50 {dimension_numbers = #tpu.dot_dimension_numbers<[1], [0], [0], [1], [0, 0, 1, 1], [], []>} : vector<128x4xbf16>, vector<4x32xbf16>, vector<128x32xf32> -> vector<128x32xf32>
    %c0_51 = arith.constant 0 : index
    %c0_52 = arith.constant 0 : index
    %c18 = arith.constant 18 : index
    %c0_53 = arith.constant 0 : index
    %69 = vector.load %arg2[%c0_51, %c0_52, %c18, %c0_53] : memref<1x1x162x4xbf16, #tpu.memory_space<vmem>>, vector<1x1x128x4xbf16>
    %70 = vector.shape_cast %69 : vector<1x1x128x4xbf16> to vector<128x4xbf16>
    %c5 = arith.constant 5 : index
    %c0_54 = arith.constant 0 : index
    %c0_55 = arith.constant 0 : index
    %71 = vector.load %arg3[%c5, %c0_54, %c0_55] : memref<9x4x32xbf16, #tpu.memory_space<vmem>>, vector<1x4x32xbf16>
    %72 = vector.shape_cast %71 : vector<1x4x32xbf16> to vector<4x32xbf16>
    %cst_56 = arith.constant dense<0.000000e+00> : vector<128x32xf32>
    %73 = tpu.matmul %70, %72, %cst_56 {dimension_numbers = #tpu.dot_dimension_numbers<[1], [0], [0], [1], [0, 0, 1, 1], [], []>} : vector<128x4xbf16>, vector<4x32xbf16>, vector<128x32xf32> -> vector<128x32xf32>
    %74 = arith.addf %68, %73 : vector<128x32xf32>
    %c0_57 = arith.constant 0 : index
    %c0_58 = arith.constant 0 : index
    %c34 = arith.constant 34 : index
    %c0_59 = arith.constant 0 : index
    %75 = vector.load %arg2[%c0_57, %c0_58, %c34, %c0_59] : memref<1x1x162x4xbf16, #tpu.memory_space<vmem>>, vector<1x1x128x4xbf16>
    %76 = vector.shape_cast %75 : vector<1x1x128x4xbf16> to vector<128x4xbf16>
    %c8 = arith.constant 8 : index
    %c0_60 = arith.constant 0 : index
    %c0_61 = arith.constant 0 : index
    %77 = vector.load %arg3[%c8, %c0_60, %c0_61] : memref<9x4x32xbf16, #tpu.memory_space<vmem>>, vector<1x4x32xbf16>
    %78 = vector.shape_cast %77 : vector<1x4x32xbf16> to vector<4x32xbf16>
    %cst_62 = arith.constant dense<0.000000e+00> : vector<128x32xf32>
    %79 = tpu.matmul %76, %78, %cst_62 {dimension_numbers = #tpu.dot_dimension_numbers<[1], [0], [0], [1], [0, 0, 1, 1], [], []>} : vector<128x4xbf16>, vector<4x32xbf16>, vector<128x32xf32> -> vector<128x32xf32>
    %80 = arith.addf %74, %79 : vector<128x32xf32>
    %cst_63 = arith.constant 0.000000e+00 : f32
    %81 = vector.shape_cast %20 : vector<128x1xi1> to vector<128x1xi1>
    %82 = vector.broadcast %81 : vector<128x1xi1> to vector<128x32xi1>
    %83 = vector.broadcast %cst_63 : f32 to vector<128x32xf32>
    %84 = arith.select %82, %80, %83 : vector<128x32xi1>, vector<128x32xf32>
    %85 = arith.addf %63, %84 : vector<128x32xf32>
    %cst_64 = arith.constant 0.000000e+00 : f32
    %86 = vector.broadcast %cst_64 : f32 to vector<128x32xf32>
    %87 = arith.maximumf %85, %86 : vector<128x32xf32>
    %88 = arith.truncf %87 : vector<128x32xf32> to vector<128x32xbf16>
    %c0_65 = arith.constant 0 : index
    %c0_66 = arith.constant 0 : index
    %89 = vector.load %arg5[%c0_65, %c0_66] : memref<32x128xbf16, #tpu.memory_space<vmem>>, vector<32x128xbf16>
    %cst_67 = arith.constant dense<0.000000e+00> : vector<128x128xf32>
    %90 = tpu.matmul %88, %89, %cst_67 {dimension_numbers = #tpu.dot_dimension_numbers<[1], [0], [0], [1], [0, 0, 1, 1], [], []>} : vector<128x32xbf16>, vector<32x128xbf16>, vector<128x128xf32> -> vector<128x128xf32>
    %c0_68 = arith.constant 0 : index
    %c0_69 = arith.constant 0 : index
    %91 = vector.load %arg6[%c0_68, %c0_69] : memref<1x128xf32, #tpu.memory_space<vmem>>, vector<1x128xf32>
    %92 = vector.broadcast %91 : vector<1x128xf32> to vector<128x128xf32>
    %93 = arith.addf %90, %92 : vector<128x128xf32>
    %94 = arith.truncf %93 : vector<128x128xf32> to vector<128x128xbf16>
    %c0_70 = arith.constant 0 : index
    %c0_71 = arith.constant 0 : index
    %c0_72 = arith.constant 0 : index
    %c0_73 = arith.constant 0 : index
    %95 = vector.load %arg7[%c0_70, %c0_71, %c0_72, %c0_73] : memref<1x1x128x128xbf16, #tpu.memory_space<vmem>>, vector<1x1x128x128xbf16>
    %96 = vector.shape_cast %95 : vector<1x1x128x128xbf16> to vector<128x128xbf16>
    %97 = vector.shape_cast %94 : vector<128x128xbf16> to vector<1x1x128x128xbf16>
    tpu.vector_store %arg7[%c0_70, %c0_71, %c0_72, %c0_73], %97 {strides = array<i32>} : memref<1x1x128x128xbf16, #tpu.memory_space<vmem>>, vector<1x1x128x128xbf16>,
    return
  }
  func.func @transform_0(%arg0: i32, %arg1: i32) -> (i32, i32, i32, i32) {
    %c0_i32 = arith.constant 0 : i32
    %c0_i32_0 = arith.constant 0 : i32
    %c0_i32_1 = arith.constant 0 : i32
    return %arg0, %arg1, %c0_i32, %c0_i32_0 : i32, i32, i32, i32
  }
  func.func @transform_1(%arg0: i32, %arg1: i32) -> (i32, i32, i32) {
    %c0_i32 = arith.constant 0 : i32
    %c0_i32_0 = arith.constant 0 : i32
    %c0_i32_1 = arith.constant 0 : i32
    %c0_i32_2 = arith.constant 0 : i32
    return %c0_i32, %c0_i32_0, %c0_i32_1 : i32, i32, i32
  }
  func.func @transform_2(%arg0: i32, %arg1: i32) -> (i32, i32) {
    %c0_i32 = arith.constant 0 : i32
    %c0_i32_0 = arith.constant 0 : i32
    %c0_i32_1 = arith.constant 0 : i32
    return %c0_i32, %c0_i32_0 : i32, i32
  }
  func.func @transform_3(%arg0: i32, %arg1: i32) -> (i32, i32) {
    %c0_i32 = arith.constant 0 : i32
    %c0_i32_0 = arith.constant 0 : i32
    %c0_i32_1 = arith.constant 0 : i32
    return %c0_i32, %c0_i32_0 : i32, i32
  }
  func.func @transform_4(%arg0: i32, %arg1: i32) -> (i32, i32) {
    %c0_i32 = arith.constant 0 : i32
    %c0_i32_0 = arith.constant 0 : i32
    %c0_i32_1 = arith.constant 0 : i32
    return %c0_i32, %c0_i32_0 : i32, i32
  }
  func.func @transform_5(%arg0: i32, %arg1: i32) -> (i32, i32, i32, i32) {
    %c0_i32 = arith.constant 0 : i32
    %c0_i32_0 = arith.constant 0 : i32
    %c0_i32_1 = arith.constant 0 : i32
    return %arg0, %arg1, %c0_i32, %c0_i32_0 : i32, i32, i32, i32
  }
}

</mosaic_0001>

<llo_original>
// kernel: rpn_head_forward.1
$region0: #{rpn_head_forward.1}
  #allocation0 [shape = 'u32[]', space=smem, size = 0x4, offset = 0x4, fixed_abs, tag = 'smem constant byte address 0x4 - core index']
  #allocation1 [shape = 'u32[144,128]{1,0:T(1,128)}', space=vmem, size = 0x12000, scoped, tag = 'internal scratch']
  %s0 = inlined_call_operand.vmem [shape: bf16[2,2,162,4], index: 0, kind: input, shape index: {}]
  %s1 = inlined_call_operand.vmem [shape: bf16[9,4,32], index: 1, kind: input, shape index: {}]
  %s2 = inlined_call_operand.vmem [shape: f32[1,32], index: 2, kind: input, shape index: {}]
  %s3 = inlined_call_operand.vmem [shape: bf16[32,128], index: 3, kind: input, shape index: {}]
  %s4 = inlined_call_operand.vmem [shape: f32[1,128], index: 4, kind: input, shape index: {}]
  %s5 = inlined_call_operand.vmem [shape: bf16[2,2,128,128], index: 5, kind: output, shape index: {}]
  %s6 = sld [smem:[#allocation0]]
  $region53: #{rpn_head_forward.1} parent=0
    _
  %s8 = ssub.s32 1, %s6
  %s9 = scalar_select 0, %s8, %s6
  loop: start=0, step=1, limit=6
  $region2: #{rpn_head_forward.1} parent=0 // loop_pre_header
    _
  $region3: #{rpn_head_forward.1} parent=0 // loop_header
    %s11 = sphi 0, %s15
    %p12 = scmp.ge.s32.totalorder %s11, 6
    %s18 = sphi 0, %s30
    %s19 = sphi 0, %s26
    %s20 = sphi 0, %s18
    %s21 = sphi 0, %s19
    %s22 = sphi 0, %s20
    %s23 = sphi 0, %s21
    %s35 = sphi 0, %s37
    %s38 = sphi 0, %s35
    %s39 = sphi 0, %s38
    %s55 = sphi 0, %s39
    %s59 = sphi 0, %s59
    %s61 = sphi 0, %s59
    %s62 = sphi 0, %s61
    %s76 = sphi 0, %s62
    %s80 = sphi 0, %s80
    %s82 = sphi 0, %s80
    %s83 = sphi 0, %s82
    %s97 = sphi 0, %s83
    %s101 = sphi 0, %s101
    %s103 = sphi 0, %s101
    %s104 = sphi 0, %s103
    %s118 = sphi 0, %s104
    %s122 = sphi 0, %s122
    %s124 = sphi 0, %s122
    %s125 = sphi 0, %s124
    %s139 = sphi 0, %s125
    %s147 = sphi 0, %s149
    %s150 = sphi 0, %s147
    %s151 = sphi 0, %s150
    %s167 = sphi 0, %s151
  $region4: #{rpn_head_forward.1} parent=0 // loop_header_branch
    %14 = sbr.rel (%p12) target = $region8
  $region5: #{rpn_head_forward.1} parent=0 // loop_body
    %s16 = ssub.s32 %s11, 1
    %s17 = ssub.s32 %s11, 2
    %s24 = sadd.s32 1, %s19
    %p25 = scmp.ge.s32.totalorder %s24, 2
    %s26 = scalar_select %p25, 0, %s24
    %s27 = sadd.s32 1, %s18
    %s28 = scalar_select %p25, %s27, %s18
    %p29 = scmp.ge.s32.totalorder %s28, 2
    %s30 = scalar_select %p29, 0, %s28
    %s31 = ssub.s32 %s18, %s30
    %s32 = ssub.s32 %s19, %s26
    %s33 = sor.u32 %s31, %s32
    %p34 = scmp.eq.s32.totalorder %s33, 0
    %s36 = sadd.s32 %s35, 1
    %s37 = scalar_select %p34, %s35, %s36
    %p40 = pneg %p34
    %p41 = scmp.eq.s32.totalorder %s11, 3
    %p42 = por %p40, %p41
    %p43 = scmp.ne.s32.totalorder %s35, %s38
    %p44 = scmp.eq.s32.totalorder %s11, 0
    %p45 = por %p43, %p44
    %p46 = scmp.ne.s32.totalorder %s35, %s38
    %p47 = scmp.eq.s32.totalorder %s16, 3
    %p48 = por %p46, %p47
    %p49 = scmp.ne.s32.totalorder %s38, %s39
    %p50 = scmp.eq.s32.totalorder %s16, 0
    %p51 = por %p49, %p50
    %p52 = scmp.ne.s32.totalorder %s38, %s39
    %p53 = scmp.eq.s32.totalorder %s17, 3
    %p54 = por %p52, %p53
    %p56 = scmp.ne.s32.totalorder %s39, %s55
    %p57 = scmp.eq.s32.totalorder %s17, 0
    %p58 = por %p56, %p57
    %s60 = sadd.s32 %s59, 1
    %p63 = scmp.eq.s32.totalorder %s11, 3
    %p64 = scmp.ne.s32.totalorder %s59, %s61
    %p65 = scmp.eq.s32.totalorder %s11, 0
    %p66 = por %p64, %p65
    %p67 = scmp.ne.s32.totalorder %s59, %s61
    %p68 = scmp.eq.s32.totalorder %s16, 3
    %p69 = por %p67, %p68
    %p70 = scmp.ne.s32.totalorder %s61, %s62
    %p71 = scmp.eq.s32.totalorder %s16, 0
    %p72 = por %p70, %p71
    %p73 = scmp.ne.s32.totalorder %s61, %s62
    %p74 = scmp.eq.s32.totalorder %s17, 3
    %p75 = por %p73, %p74
    %p77 = scmp.ne.s32.totalorder %s62, %s76
    %p78 = scmp.eq.s32.totalorder %s17, 0
    %p79 = por %p77, %p78
    %s81 = sadd.s32 %s80, 1
    %p84 = scmp.eq.s32.totalorder %s11, 3
    %p85 = scmp.ne.s32.totalorder %s80, %s82
    %p86 = scmp.eq.s32.totalorder %s11, 0
    %p87 = por %p85, %p86
    %p88 = scmp.ne.s32.totalorder %s80, %s82
    %p89 = scmp.eq.s32.totalorder %s16, 3
    %p90 = por %p88, %p89
    %p91 = scmp.ne.s32.totalorder %s82, %s83
    %p92 = scmp.eq.s32.totalorder %s16, 0
    %p93 = por %p91, %p92
    %p94 = scmp.ne.s32.totalorder %s82, %s83
    %p95 = scmp.eq.s32.totalorder %s17, 3
    %p96 = por %p94, %p95
    %p98 = scmp.ne.s32.totalorder %s83, %s97
    %p99 = scmp.eq.s32.totalorder %s17, 0
    %p100 = por %p98, %p99
    %s102 = sadd.s32 %s101, 1
    %p105 = scmp.eq.s32.totalorder %s11, 3
    %p106 = scmp.ne.s32.totalorder %s101, %s103
    %p107 = scmp.eq.s32.totalorder %s11, 0
    %p108 = por %p106, %p107
    %p109 = scmp.ne.s32.totalorder %s101, %s103
    %p110 = scmp.eq.s32.totalorder %s16, 3
    %p111 = por %p109, %p110
    %p112 = scmp.ne.s32.totalorder %s103, %s104
    %p113 = scmp.eq.s32.totalorder %s16, 0
    %p114 = por %p112, %p113
    %p115 = scmp.ne.s32.totalorder %s103, %s104
    %p116 = scmp.eq.s32.totalorder %s17, 3
    %p117 = por %p115, %p116
    %p119 = scmp.ne.s32.totalorder %s104, %s118
    %p120 = scmp.eq.s32.totalorder %s17, 0
    %p121 = por %p119, %p120
    %s123 = sadd.s32 %s122, 1
    %p126 = scmp.eq.s32.totalorder %s11, 3
    %p127 = scmp.ne.s32.totalorder %s122, %s124
    %p128 = scmp.eq.s32.totalorder %s11, 0
    %p129 = por %p127, %p128
    %p130 = scmp.ne.s32.totalorder %s122, %s124
    %p131 = scmp.eq.s32.totalorder %s16, 3
    %p132 = por %p130, %p131
    %p133 = scmp.ne.s32.totalorder %s124, %s125
    %p134 = scmp.eq.s32.totalorder %s16, 0
    %p135 = por %p133, %p134
    %p136 = scmp.ne.s32.totalorder %s124, %s125
    %p137 = scmp.eq.s32.totalorder %s17, 3
    %p138 = por %p136, %p137
    %p140 = scmp.ne.s32.totalorder %s125, %s139
    %p141 = scmp.eq.s32.totalorder %s17, 0
    %p142 = por %p140, %p141
    %s143 = ssub.s32 %s18, %s30
    %s144 = ssub.s32 %s19, %s26
    %s145 = sor.u32 %s143, %s144
    %p146 = scmp.eq.s32.totalorder %s145, 0
    %s148 = sadd.s32 %s147, 1
    %s149 = scalar_select %p146, %s147, %s148
    %p152 = pneg %p146
    %p153 = scmp.eq.s32.totalorder %s11, 3
    %p154 = por %p152, %p153
    %p155 = scmp.ne.s32.totalorder %s147, %s150
    %p156 = scmp.eq.s32.totalorder %s11, 0
    %p157 = por %p155, %p156
    %p158 = scmp.ne.s32.totalorder %s147, %s150
    %p159 = scmp.eq.s32.totalorder %s16, 3
    %p160 = por %p158, %p159
    %p161 = scmp.ne.s32.totalorder %s150, %s151
    %p162 = scmp.eq.s32.totalorder %s16, 0
    %p163 = por %p161, %p162
    %p164 = scmp.ne.s32.totalorder %s150, %s151
    %p165 = scmp.eq.s32.totalorder %s17, 3
    %p166 = por %p164, %p165
    %p168 = scmp.ne.s32.totalorder %s151, %s167
    %p169 = scmp.eq.s32.totalorder %s17, 0
    %p170 = por %p168, %p169
    %p171 = scmp.le.s32.totalorder 1, %s11
    %p172 = scmp.lt.s32.totalorder %s11, 5
    %p173 = pnand %p171, %p172
    %p174 = pneg %p173
    // Predicated region
    $region9: #{rpn_head_forward.1} parent=5 // pred_check
      _
    $region10: #{rpn_head_forward.1} parent=5 // pred_check_branch
      %176 = sbr.rel (%p173) target = $region12
    $region11: #{rpn_head_forward.1} parent=5 // pred_region
      %s177 = ssub.s32 %s11, 1
      // Predicated region
      $region13: #{rpn_head_forward.1} parent=11 // pred_check
        %p178 = pneg %p72
      $region14: #{rpn_head_forward.1} parent=11 // pred_check_branch
        %180 = sbr.rel (%p178) target = $region16
      $region15: #{rpn_head_forward.1} parent=11 // pred_region
        _
      $region16: #{rpn_head_forward.1} parent=11 // pred_fallthru
        _
      // Predicated region
      $region17: #{rpn_head_forward.1} parent=11 // pred_check
        %p181 = pneg %p93
      $region18: #{rpn_head_forward.1} parent=11 // pred_check_branch
        %183 = sbr.rel (%p181) target = $region20
      $region19: #{rpn_head_forward.1} parent=11 // pred_region
        _
      $region20: #{rpn_head_forward.1} parent=11 // pred_fallthru
        _
      // Predicated region
      $region21: #{rpn_head_forward.1} parent=11 // pred_check
        %p184 = pneg %p114
      $region22: #{rpn_head_forward.1} parent=11 // pred_check_branch
        %186 = sbr.rel (%p184) target = $region24
      $region23: #{rpn_head_forward.1} parent=11 // pred_region
        _
      $region24: #{rpn_head_forward.1} parent=11 // pred_fallthru
        _
      // Predicated region
      $region25: #{rpn_head_forward.1} parent=11 // pred_check
        %p187 = pneg %p135
      $region26: #{rpn_head_forward.1} parent=11 // pred_check_branch
        %189 = sbr.rel (%p187) target = $region28
      $region27: #{rpn_head_forward.1} parent=11 // pred_region
        _
      $region28: #{rpn_head_forward.1} parent=11 // pred_fallthru
        _
    $region12: #{rpn_head_forward.1} parent=5 // pred_fallthru
      _
    %p190 = scmp.lt.s32.totalorder %s11, 4
    // Predicated region
    $region29: #{rpn_head_forward.1} parent=5 // pred_check
      %p191 = pneg %p190
    $region30: #{rpn_head_forward.1} parent=5 // pred_check_branch
      %193 = sbr.rel (%p191) target = $region32
    $region31: #{rpn_head_forward.1} parent=5 // pred_region
      // Predicated region
      $region33: #{rpn_head_forward.1} parent=31 // pred_check
        %p194 = pneg %p45
      $region34: #{rpn_head_forward.1} parent=31 // pred_check_branch
        %196 = sbr.rel (%p194) target = $region36
      $region35: #{rpn_head_forward.1} parent=31 // pred_region
        %p197 = scmp.lt.s32.totalorder %s18, 1
        %s198 = scalar_select %p197, %s18, 1
        %p199 = scmp.lt.s32.totalorder %s19, 1
        %s200 = scalar_select %p199, %s19, 1
        %s201 = smul.addr %s200, 21
        %s202 = smul.addr %s198, 42
        %s203 = sadd.s32 %s201, %s202
        %s204 = smul.addr %s203, 4
        %s205 = scalar_lea.vmem %s0, %s204
      $region36: #{rpn_head_forward.1} parent=31 // pred_fallthru
        _
    $region32: #{rpn_head_forward.1} parent=5 // pred_fallthru
      _
    %p206 = scmp.le.s32.totalorder 1, %s11
    %p207 = scmp.lt.s32.totalorder %s11, 5
    %p208 = pnand %p206, %p207
    %p209 = pneg %p208
    // Predicated region
    $region37: #{rpn_head_forward.1} parent=5 // pred_check
      _
    $region38: #{rpn_head_forward.1} parent=5 // pred_check_branch
      %211 = sbr.rel (%p208) target = $region40
    $region39: #{rpn_head_forward.1} parent=5 // pred_region
      %s212 = ssub.s32 %s11, 1
      %p213 = scmp.lt.s32.totalorder %s20, 1
      %s214 = scalar_select %p213, %s20, 1
      %p215 = scmp.lt.s32.totalorder %s21, 1
      %s216 = scalar_select %p215, %s21, 1
      %s217 = smul.addr %s216, 21
      %s218 = smul.addr %s214, 42
      %s219 = sadd.s32 %s217, %s218
      %s220 = smul.addr %s219, 4
      %s221 = scalar_lea.vmem %s0, %s220
      %p222 = pneg %p51
      %p223 = pneg %p48
      %p224 = pneg %p72
      %p225 = pneg %p69
      %p226 = pneg %p93
      %p227 = pneg %p90
      %p228 = pneg %p114
      %p229 = pneg %p111
      %p230 = pneg %p135
      %p231 = pneg %p132
      %p232 = pneg %p163
      %p233 = pneg %p160
      %p234 = scmp.lt.s32.totalorder %s20, 1
      %s235 = scalar_select %p234, %s20, 1
      %p236 = scmp.lt.s32.totalorder %s21, 1
      %s237 = scalar_select %p236, %s21, 1
      %s238 = smul.addr %s237, 16
      %s239 = smul.addr %s235, 32
      %s240 = sadd.s32 %s238, %s239
      %s241 = smul.addr %s240, 4
      %s242 = scalar_lea.vmem %s5, %s241
      %p243 = scmp.lt.s32.totalorder %s20, 1
      %s244 = scalar_select %p243, %s20, 1
      %p245 = scmp.lt.s32.totalorder %s21, 1
      %s246 = scalar_select %p245, %s21, 1
      %s247 = smul.addr %s246, 21
      %s248 = smul.addr %s244, 42
      %s249 = sadd.s32 %s247, %s248
      %s250 = smul.addr %s249, 4
      %s251 = scalar_lea.vmem %s0, %s250
      %p252 = scmp.lt.s32.totalorder %s20, 1
      %s253 = scalar_select %p252, %s20, 1
      %p254 = scmp.lt.s32.totalorder %s21, 1
      %s255 = scalar_select %p254, %s21, 1
      %s256 = smul.addr %s255, 16
      %s257 = smul.addr %s253, 32
      %s258 = sadd.s32 %s256, %s257
      %s259 = smul.addr %s258, 4
      %s260 = scalar_lea.vmem %s5, %s259
      %v262 = vlaneseq
      %v263 = vshrl.u32 %v262, 7
      %v264 = vadd.s32 %v263, 8
      %v265 = vadd.s32 %v263, 16
      %v266 = vadd.s32 %v263, 24
      %v267 = vadd.s32 %v263, 32
      %v268 = vadd.s32 %v263, 40
      %v269 = vadd.s32 %v263, 48
      %v270 = vadd.s32 %v263, 56
      %v271 = vadd.s32 %v263, 64
      %v272 = vadd.s32 %v263, 72
      %v273 = vadd.s32 %v263, 80
      %v274 = vadd.s32 %v263, 88
      %v275 = vadd.s32 %v263, 96
      %v276 = vadd.s32 %v263, 104
      %v277 = vadd.s32 %v263, 112
      %v278 = vadd.s32 %v263, 120
      %vm279 = vcmp.lt.s32.totalorder %v263, 0
      %v280 = vsub.s32 0, %v263
      %v281 = vsel %vm279, %v280, %v263
      %v282 = vshrl.u32 %v281, 4
      %v283 = vand.u32 %v281, 15
      %v284 = vsub.s32 0, %v283
      %v285 = vsel %vm279, %v284, %v283
      %vm286 = vcmp.lt.s32.totalorder %v264, 0
      %v287 = vsub.s32 0, %v264
      %v288 = vsel %vm286, %v287, %v264
      %v289 = vshrl.u32 %v288, 4
      %v290 = vand.u32 %v288, 15
      %v291 = vsub.s32 0, %v290
      %v292 = vsel %vm286, %v291, %v290
      %vm293 = vcmp.lt.s32.totalorder %v265, 0
      %v294 = vsub.s32 0, %v265
      %v295 = vsel %vm293, %v294, %v265
      %v296 = vshrl.u32 %v295, 4
      %v297 = vand.u32 %v295, 15
      %v298 = vsub.s32 0, %v297
      %v299 = vsel %vm293, %v298, %v297
      %vm300 = vcmp.lt.s32.totalorder %v266, 0
      %v301 = vsub.s32 0, %v266
      %v302 = vsel %vm300, %v301, %v266
      %v303 = vshrl.u32 %v302, 4
      %v304 = vand.u32 %v302, 15
      %v305 = vsub.s32 0, %v304
      %v306 = vsel %vm300, %v305, %v304
      %vm307 = vcmp.lt.s32.totalorder %v267, 0
      %v308 = vsub.s32 0, %v267
      %v309 = vsel %vm307, %v308, %v267
      %v310 = vshrl.u32 %v309, 4
      %v311 = vand.u32 %v309, 15
      %v312 = vsub.s32 0, %v311
      %v313 = vsel %vm307, %v312, %v311
      %vm314 = vcmp.lt.s32.totalorder %v268, 0
      %v315 = vsub.s32 0, %v268
      %v316 = vsel %vm314, %v315, %v268
      %v317 = vshrl.u32 %v316, 4
      %v318 = vand.u32 %v316, 15
      %v319 = vsub.s32 0, %v318
      %v320 = vsel %vm314, %v319, %v318
      %vm321 = vcmp.lt.s32.totalorder %v269, 0
      %v322 = vsub.s32 0, %v269
      %v323 = vsel %vm321, %v322, %v269
      %v324 = vshrl.u32 %v323, 4
      %v325 = vand.u32 %v323, 15
      %v326 = vsub.s32 0, %v325
      %v327 = vsel %vm321, %v326, %v325
      %vm328 = vcmp.lt.s32.totalorder %v270, 0
      %v329 = vsub.s32 0, %v270
      %v330 = vsel %vm328, %v329, %v270
      %v331 = vshrl.u32 %v330, 4
      %v332 = vand.u32 %v330, 15
      %v333 = vsub.s32 0, %v332
      %v334 = vsel %vm328, %v333, %v332
      %vm335 = vcmp.lt.s32.totalorder %v271, 0
      %v336 = vsub.s32 0, %v271
      %v337 = vsel %vm335, %v336, %v271
      %v338 = vshrl.u32 %v337, 4
      %v339 = vand.u32 %v337, 15
      %v340 = vsub.s32 0, %v339
      %v341 = vsel %vm335, %v340, %v339
      %vm342 = vcmp.lt.s32.totalorder %v272, 0
      %v343 = vsub.s32 0, %v272
      %v344 = vsel %vm342, %v343, %v272
      %v345 = vshrl.u32 %v344, 4
      %v346 = vand.u32 %v344, 15
      %v347 = vsub.s32 0, %v346
      %v348 = vsel %vm342, %v347, %v346
      %vm349 = vcmp.lt.s32.totalorder %v273, 0
      %v350 = vsub.s32 0, %v273
      %v351 = vsel %vm349, %v350, %v273
      %v352 = vshrl.u32 %v351, 4
      %v353 = vand.u32 %v351, 15
      %v354 = vsub.s32 0, %v353
      %v355 = vsel %vm349, %v354, %v353
      %vm356 = vcmp.lt.s32.totalorder %v274, 0
      %v357 = vsub.s32 0, %v274
      %v358 = vsel %vm356, %v357, %v274
      %v359 = vshrl.u32 %v358, 4
      %v360 = vand.u32 %v358, 15
      %v361 = vsub.s32 0, %v360
      %v362 = vsel %vm356, %v361, %v360
      %vm363 = vcmp.lt.s32.totalorder %v275, 0
      %v364 = vsub.s32 0, %v275
      %v365 = vsel %vm363, %v364, %v275
      %v366 = vshrl.u32 %v365, 4
      %v367 = vand.u32 %v365, 15
      %v368 = vsub.s32 0, %v367
      %v369 = vsel %vm363, %v368, %v367
      %vm370 = vcmp.lt.s32.totalorder %v276, 0
      %v371 = vsub.s32 0, %v276
      %v372 = vsel %vm370, %v371, %v276
      %v373 = vshrl.u32 %v372, 4
      %v374 = vand.u32 %v372, 15
      %v375 = vsub.s32 0, %v374
      %v376 = vsel %vm370, %v375, %v374
      %vm377 = vcmp.lt.s32.totalorder %v277, 0
      %v378 = vsub.s32 0, %v277
      %v379 = vsel %vm377, %v378, %v277
      %v380 = vshrl.u32 %v379, 4
      %v381 = vand.u32 %v379, 15
      %v382 = vsub.s32 0, %v381
      %v383 = vsel %vm377, %v382, %v381
      %vm384 = vcmp.lt.s32.totalorder %v278, 0
      %v385 = vsub.s32 0, %v278
      %v386 = vsel %vm384, %v385, %v278
      %v387 = vshrl.u32 %v386, 4
      %v388 = vand.u32 %v386, 15
      %v389 = vsub.s32 0, %v388
      %v390 = vsel %vm384, %v389, %v388
      %vm391 = vcmp.ne.s32.totalorder %v285, 0
      %vm392 = vcmp.ne.s32.totalorder %v292, 0
      %vm393 = vcmp.ne.s32.totalorder %v299, 0
      %vm394 = vcmp.ne.s32.totalorder %v306, 0
      %vm395 = vcmp.ne.s32.totalorder %v313, 0
      %vm396 = vcmp.ne.s32.totalorder %v320, 0
      %vm397 = vcmp.ne.s32.totalorder %v327, 0
      %vm398 = vcmp.ne.s32.totalorder %v334, 0
      %vm399 = vcmp.ne.s32.totalorder %v341, 0
      %vm400 = vcmp.ne.s32.totalorder %v348, 0
      %vm401 = vcmp.ne.s32.totalorder %v355, 0
      %vm402 = vcmp.ne.s32.totalorder %v362, 0
      %vm403 = vcmp.ne.s32.totalorder %v369, 0
      %vm404 = vcmp.ne.s32.totalorder %v376, 0
      %vm405 = vcmp.ne.s32.totalorder %v383, 0
      %vm406 = vcmp.ne.s32.totalorder %v390, 0
      %vm407 = vcmp.lt.s32.totalorder %v285, 0
      %vm408 = vcmp.lt.s32.totalorder %v292, 0
      %vm409 = vcmp.lt.s32.totalorder %v299, 0
      %vm410 = vcmp.lt.s32.totalorder %v306, 0
      %vm411 = vcmp.lt.s32.totalorder %v313, 0
      %vm412 = vcmp.lt.s32.totalorder %v320, 0
      %vm413 = vcmp.lt.s32.totalorder %v327, 0
      %vm414 = vcmp.lt.s32.totalorder %v334, 0
      %vm415 = vcmp.lt.s32.totalorder %v341, 0
      %vm416 = vcmp.lt.s32.totalorder %v348, 0
      %vm417 = vcmp.lt.s32.totalorder %v355, 0
      %vm418 = vcmp.lt.s32.totalorder %v362, 0
      %vm419 = vcmp.lt.s32.totalorder %v369, 0
      %vm420 = vcmp.lt.s32.totalorder %v376, 0
      %vm421 = vcmp.lt.s32.totalorder %v383, 0
      %vm422 = vcmp.lt.s32.totalorder %v390, 0
      %vm423 = vmand %vm407, %vm391
      %vm424 = vmand %vm408, %vm392
      %vm425 = vmand %vm409, %vm393
      %vm426 = vmand %vm410, %vm394
      %vm427 = vmand %vm411, %vm395
      %vm428 = vmand %vm412, %vm396
      %vm429 = vmand %vm413, %vm397
      %vm430 = vmand %vm414, %vm398
      %vm431 = vmand %vm415, %vm399
      %vm432 = vmand %vm416, %vm400
      %vm433 = vmand %vm417, %vm401
      %vm434 = vmand %vm418, %vm402
      %vm435 = vmand %vm419, %vm403
      %vm436 = vmand %vm420, %vm404
      %vm437 = vmand %vm421, %vm405
      %vm438 = vmand %vm422, %vm406
      %v439 = vadd.s32 %v285, 16
      %v440 = vadd.s32 %v292, 16
      %v441 = vadd.s32 %v299, 16
      %v442 = vadd.s32 %v306, 16
      %v443 = vadd.s32 %v313, 16
      %v444 = vadd.s32 %v320, 16
      %v445 = vadd.s32 %v327, 16
      %v446 = vadd.s32 %v334, 16
      %v447 = vadd.s32 %v341, 16
      %v448 = vadd.s32 %v348, 16
      %v449 = vadd.s32 %v355, 16
      %v450 = vadd.s32 %v362, 16
      %v451 = vadd.s32 %v369, 16
      %v452 = vadd.s32 %v376, 16
      %v453 = vadd.s32 %v383, 16
      %v454 = vadd.s32 %v390, 16
      %v455 = vsel %vm423, %v439, %v285
      %v456 = vsel %vm424, %v440, %v292
      %v457 = vsel %vm425, %v441, %v299
      %v458 = vsel %vm426, %v442, %v306
      %v459 = vsel %vm427, %v443, %v313
      %v460 = vsel %vm428, %v444, %v320
      %v461 = vsel %vm429, %v445, %v327
      %v462 = vsel %vm430, %v446, %v334
      %v463 = vsel %vm431, %v447, %v341
      %v464 = vsel %vm432, %v448, %v348
      %v465 = vsel %vm433, %v449, %v355
      %v466 = vsel %vm434, %v450, %v362
      %v467 = vsel %vm435, %v451, %v369
      %v468 = vsel %vm436, %v452, %v376
      %v469 = vsel %vm437, %v453, %v383
      %v470 = vsel %vm438, %v454, %v390
      %vm471 = vcmp.ge.s32.totalorder %v455, 1
      %vm472 = vcmp.ge.s32.totalorder %v456, 1
      %vm473 = vcmp.ge.s32.totalorder %v457, 1
      %vm474 = vcmp.ge.s32.totalorder %v458, 1
      %vm475 = vcmp.ge.s32.totalorder %v459, 1
      %vm476 = vcmp.ge.s32.totalorder %v460, 1
      %vm477 = vcmp.ge.s32.totalorder %v461, 1
      %vm478 = vcmp.ge.s32.totalorder %v462, 1
      %vm479 = vcmp.ge.s32.totalorder %v463, 1
      %vm480 = vcmp.ge.s32.totalorder %v464, 1
      %vm481 = vcmp.ge.s32.totalorder %v465, 1
      %vm482 = vcmp.ge.s32.totalorder %v466, 1
      %vm483 = vcmp.ge.s32.totalorder %v467, 1
      %vm484 = vcmp.ge.s32.totalorder %v468, 1
      %vm485 = vcmp.ge.s32.totalorder %v469, 1
      %vm486 = vcmp.ge.s32.totalorder %v470, 1
      %vm487 = vcmp.le.s32.totalorder %v455, 14
      %vm488 = vcmp.le.s32.totalorder %v456, 14
      %vm489 = vcmp.le.s32.totalorder %v457, 14
      %vm490 = vcmp.le.s32.totalorder %v458, 14
      %vm491 = vcmp.le.s32.totalorder %v459, 14
      %vm492 = vcmp.le.s32.totalorder %v460, 14
      %vm493 = vcmp.le.s32.totalorder %v461, 14
      %vm494 = vcmp.le.s32.totalorder %v462, 14
      %vm495 = vcmp.le.s32.totalorder %v463, 14
      %vm496 = vcmp.le.s32.totalorder %v464, 14
      %vm497 = vcmp.le.s32.totalorder %v465, 14
      %vm498 = vcmp.le.s32.totalorder %v466, 14
      %vm499 = vcmp.le.s32.totalorder %v467, 14
      %vm500 = vcmp.le.s32.totalorder %v468, 14
      %vm501 = vcmp.le.s32.totalorder %v469, 14
      %vm502 = vcmp.le.s32.totalorder %v470, 14
      %v503 = vld [vmem:[%s2] sm:$0x1]
      %v505 = vlaneseq
      %v506 = vshrl.u32 %v505, 7
      %v507 = vsub.s32 0, %v506
      %v508 = vrot.slane %v503, %v507
      %v510 = vld [vmem:[%s251] sm:$0xf]
      %v511 = vld [vmem:[%s251 + $0x4] sm:$0xf]
      %v512 = vld [vmem:[%s251 + $0x8] sm:$0xf]
      %v513 = vld [vmem:[%s251 + $0xc] sm:$0xf]
      %v514 = vld [vmem:[%s251 + $0x10] sm:$0xf]
      %v515 = vld [vmem:[%s251 + $0x14] sm:$0xf]
      %v516 = vld [vmem:[%s251 + $0x18] sm:$0xf]
      %v517 = vld [vmem:[%s251 + $0x1c] sm:$0xf]
      %v518 = vld [vmem:[%s251 + $0x20] sm:$0xf]
      %v519 = vld [vmem:[%s251 + $0x24] sm:$0xf]
      %v520 = vld [vmem:[%s251 + $0x28] sm:$0xf]
      %v521 = vld [vmem:[%s251 + $0x2c] sm:$0xf]
      %v522 = vld [vmem:[%s251 + $0x30] sm:$0xf]
      %v523 = vld [vmem:[%s251 + $0x34] sm:$0xf]
      %v524 = vld [vmem:[%s251 + $0x38] sm:$0xf]
      %v525 = vld [vmem:[%s251 + $0x3c] sm:$0xf]
      %v526 = vld [vmem:[%s251 + $0x40] sm:$0x1]
      %s527 = scalar_lea.vmem %s1, 2
      %v528 = vld [vmem:[%s527] sm:$0x3]
      %v546 = vunpack.c.l.b16 %v510
      %v547 = vunpack.c.l.b16 %v511
      %v548 = vunpack.c.l.b16 %v512
      %v549 = vunpack.c.l.b16 %v513
      %v550 = vunpack.c.l.b16 %v514
      %v551 = vunpack.c.l.b16 %v515
      %v552 = vunpack.c.l.b16 %v516
      %v553 = vunpack.c.l.b16 %v517
      %v554 = vunpack.c.l.b16 %v518
      %v555 = vunpack.c.l.b16 %v519
      %v556 = vunpack.c.l.b16 %v520
      %v557 = vunpack.c.l.b16 %v521
      %v558 = vunpack.c.l.b16 %v522
      %v559 = vunpack.c.l.b16 %v523
      %v560 = vunpack.c.l.b16 %v524
      %v561 = vunpack.c.l.b16 %v525
      %v562 = vunpack.c.l.b16 %v526
      %v563 = vpack.c.b16 %v547, %v546
      %v564 = vpack.c.b16 %v549, %v548
      %v565 = vpack.c.b16 %v551, %v550
      %v566 = vpack.c.b16 %v553, %v552
      %v567 = vpack.c.b16 %v555, %v554
      %v568 = vpack.c.b16 %v557, %v556
      %v569 = vpack.c.b16 %v559, %v558
      %v570 = vpack.c.b16 %v561, %v560
      %v571 = vpack.c.b16 %v562, %v562
      %vm572 = vsmask.f32 7424
      %v574 = vshrl.u32 %v563, 16
      %v576 = vshll.u32 %v563, 16
      %v578 = vrot.slane %v576, 1
      %v579 = vor.u32 %v574, %v578
      %v581 = vshll.u32 %v564, 16
      %v583 = vrot.slane %v581, 1
      %v584 = vsel %vm572, %v579, %v583
      %v585 = vshrl.u32 %v564, 16
      %v587 = vor.u32 %v585, %v583
      %v589 = vshll.u32 %v565, 16
      %v591 = vrot.slane %v589, 1
      %v592 = vsel %vm572, %v587, %v591
      %v593 = vshrl.u32 %v565, 16
      %v595 = vor.u32 %v593, %v591
      %v597 = vshll.u32 %v566, 16
      %v599 = vrot.slane %v597, 1
      %v600 = vsel %vm572, %v595, %v599
      %v601 = vshrl.u32 %v566, 16
      %v603 = vor.u32 %v601, %v599
      %v605 = vshll.u32 %v567, 16
      %v607 = vrot.slane %v605, 1
      %v608 = vsel %vm572, %v603, %v607
      %v609 = vshrl.u32 %v567, 16
      %v611 = vor.u32 %v609, %v607
      %v613 = vshll.u32 %v568, 16
      %v615 = vrot.slane %v613, 1
      %v616 = vsel %vm572, %v611, %v615
      %v617 = vshrl.u32 %v568, 16
      %v619 = vor.u32 %v617, %v615
      %v621 = vshll.u32 %v569, 16
      %v623 = vrot.slane %v621, 1
      %v624 = vsel %vm572, %v619, %v623
      %v625 = vshrl.u32 %v569, 16
      %v627 = vor.u32 %v625, %v623
      %v629 = vshll.u32 %v570, 16
      %v631 = vrot.slane %v629, 1
      %v632 = vsel %vm572, %v627, %v631
      %v633 = vshrl.u32 %v570, 16
      %v635 = vor.u32 %v633, %v631
      %v637 = vshll.u32 %v571, 16
      %v639 = vrot.slane %v637, 1
      %v640 = vsel %vm572, %v635, %v639
      %vm641 = vcmask 31744
      %v643 = vsel %vm641, %v584, 0
      %v646 = vsel %vm641, %v592, 0
      %v649 = vsel %vm641, %v600, 0
      %v652 = vsel %vm641, %v608, 0
      %v655 = vsel %vm641, %v616, 0
      %v658 = vsel %vm641, %v624, 0
      %v661 = vsel %vm641, %v632, 0
      %v664 = vsel %vm641, %v640, 0
      %vm666 = vcmask 1041408
      %v668 = vsel %vm666, %v528, 0
      %670 = vmatprep.subr.bf16.mxu0 0
      %671 = vmatpush1.bf16.msra.mxu0 %v668
      %672 = vmatprep.subr.bf16.mxu0 0
      %673 = vmatpush1.bf16.msra.mxu0 0
      %674 = vmatprep.subr.bf16.mxu0 0
      %675 = vmatpush1.bf16.msra.mxu0 0
      %676 = vmatprep.subr.bf16.mxu0 0
      %677 = vmatpush1.bf16.msra.mxu0 0
      %678 = vmatprep.subr.bf16.mxu0 0
      %679 = vmatpush1.bf16.msra.mxu0 0
      %680 = vmatprep.subr.bf16.mxu0 0
      %681 = vmatpush1.bf16.msra.mxu0 0
      %682 = vmatprep.subr.bf16.mxu0 0
      %683 = vmatpush1.bf16.msra.mxu0 0
      %684 = vmatprep.subr.bf16.mxu0 0
      %685 = vmatpush1.bf16.msra.mxu0 0
      %686 = vmatprep.subr.bf16.mxu0 0
      %687 = vmatpush1.bf16.msra.mxu0 0
      %688 = vmatprep.subr.bf16.mxu0 0
      %689 = vmatpush1.bf16.msra.mxu0 0
      %690 = vmatprep.subr.bf16.mxu0 0
      %691 = vmatpush1.bf16.msra.mxu0 0
      %692 = vmatprep.subr.bf16.mxu0 0
      %693 = vmatpush1.bf16.msra.mxu0 0
      %694 = vmatprep.subr.bf16.mxu0 0
      %695 = vmatpush1.bf16.msra.mxu0 0
      %696 = vmatprep.subr.bf16.mxu0 0
      %697 = vmatpush1.bf16.msra.mxu0 0
      %698 = vmatprep.subr.bf16.mxu0 0
      %699 = vmatpush1.bf16.msra.mxu0 0
      %700 = vmatprep.subr.bf16.mxu0 0
      %701 = vmatpush1.bf16.msra.mxu0 0
      %702 = vmatprep.mubr.bf16.mxu0 0
      %703 = vmatmul.mubr.bf16.gmra.mrb[0].mxu0 %v643
      %v704 = vpop.f32.mrb[0].mxu0
      %v705 = vadd.f32 0.0, %v704
      %v706 = vpop.f32.mrb[0].mxu0
      %v707 = vpop.f32.mrb[0].mxu0
      %v708 = vadd.f32 0.0, %v707
      %v709 = vpop.f32.mrb[0].mxu0
      %710 = vmatprep.mubr.bf16.mxu0 0
      %711 = vmatmul.mubr.bf16.gmra.mrb[0].mxu0 %v646
      %v712 = vpop.f32.mrb[0].mxu0
      %v713 = vadd.f32 0.0, %v712
      %v714 = vpop.f32.mrb[0].mxu0
      %v715 = vpop.f32.mrb[0].mxu0
      %v716 = vadd.f32 0.0, %v715
      %v717 = vpop.f32.mrb[0].mxu0
      %718 = vmatprep.mubr.bf16.mxu0 0
      %719 = vmatmul.mubr.bf16.gmra.mrb[0].mxu0 %v649
      %v720 = vpop.f32.mrb[0].mxu0
      %v721 = vadd.f32 0.0, %v720
      %v722 = vpop.f32.mrb[0].mxu0
      %v723 = vpop.f32.mrb[0].mxu0
      %v724 = vadd.f32 0.0, %v723
      %v725 = vpop.f32.mrb[0].mxu0
      %726 = vmatprep.mubr.bf16.mxu0 0
      %727 = vmatmul.mubr.bf16.gmra.mrb[0].mxu0 %v652
      %v728 = vpop.f32.mrb[0].mxu0
      %v729 = vadd.f32 0.0, %v728
      %v730 = vpop.f32.mrb[0].mxu0
      %v731 = vpop.f32.mrb[0].mxu0
      %v732 = vadd.f32 0.0, %v731
      %v733 = vpop.f32.mrb[0].mxu0
      %734 = vmatprep.mubr.bf16.mxu0 0
      %735 = vmatmul.mubr.bf16.gmra.mrb[0].mxu0 %v655
      %v736 = vpop.f32.mrb[0].mxu0
      %v737 = vadd.f32 0.0, %v736
      %v738 = vpop.f32.mrb[0].mxu0
      %v739 = vpop.f32.mrb[0].mxu0
      %v740 = vadd.f32 0.0, %v739
      %v741 = vpop.f32.mrb[0].mxu0
      %742 = vmatprep.mubr.bf16.mxu0 0
      %743 = vmatmul.mubr.bf16.gmra.mrb[0].mxu0 %v658
      %v744 = vpop.f32.mrb[0].mxu0
      %v745 = vadd.f32 0.0, %v744
      %v746 = vpop.f32.mrb[0].mxu0
      %v747 = vpop.f32.mrb[0].mxu0
      %v748 = vadd.f32 0.0, %v747
      %v749 = vpop.f32.mrb[0].mxu0
      %750 = vmatprep.mubr.bf16.mxu0 0
      %751 = vmatmul.mubr.bf16.gmra.mrb[0].mxu0 %v661
      %v752 = vpop.f32.mrb[0].mxu0
      %v753 = vadd.f32 0.0, %v752
      %v754 = vpop.f32.mrb[0].mxu0
      %v755 = vpop.f32.mrb[0].mxu0
      %v756 = vadd.f32 0.0, %v755
      %v757 = vpop.f32.mrb[0].mxu0
      %758 = vmatprep.mubr.bf16.mxu0 0
      %759 = vmatmul.mubr.bf16.gmra.mrb[0].mxu0 %v664
      %v760 = vpop.f32.mrb[0].mxu0
      %v761 = vadd.f32 0.0, %v760
      %v762 = vpop.f32.mrb[0].mxu0
      %v763 = vpop.f32.mrb[0].mxu0
      %v764 = vadd.f32 0.0, %v763
      %v765 = vpop.f32.mrb[0].mxu0
      %766 = vdwg.mxu0
      %v767 = vadd.f32 %v508, %v705
      %v768 = vadd.f32 %v508, %v708
      %v769 = vadd.f32 %v508, %v713
      %v770 = vadd.f32 %v508, %v716
      %v771 = vadd.f32 %v508, %v721
      %v772 = vadd.f32 %v508, %v724
      %v773 = vadd.f32 %v508, %v729
      %v774 = vadd.f32 %v508, %v732
      %v775 = vadd.f32 %v508, %v737
      %v776 = vadd.f32 %v508, %v740
      %v777 = vadd.f32 %v508, %v745
      %v778 = vadd.f32 %v508, %v748
      %v779 = vadd.f32 %v508, %v753
      %v780 = vadd.f32 %v508, %v756
      %v781 = vadd.f32 %v508, %v761
      %v782 = vadd.f32 %v508, %v764
      %v783 = vld [vmem:[%s251 + $0x8] sm:$0xf]
      %v784 = vld [vmem:[%s251 + $0xc] sm:$0xf]
      %v785 = vld [vmem:[%s251 + $0x10] sm:$0xf]
      %v786 = vld [vmem:[%s251 + $0x14] sm:$0xf]
      %v787 = vld [vmem:[%s251 + $0x18] sm:$0xf]
      %v788 = vld [vmem:[%s251 + $0x1c] sm:$0xf]
      %v789 = vld [vmem:[%s251 + $0x20] sm:$0xf]
      %v790 = vld [vmem:[%s251 + $0x24] sm:$0xf]
      %v791 = vld [vmem:[%s251 + $0x28] sm:$0xf]
      %v792 = vld [vmem:[%s251 + $0x2c] sm:$0xf]
      %v793 = vld [vmem:[%s251 + $0x30] sm:$0xf]
      %v794 = vld [vmem:[%s251 + $0x34] sm:$0xf]
      %v795 = vld [vmem:[%s251 + $0x38] sm:$0xf]
      %v796 = vld [vmem:[%s251 + $0x3c] sm:$0xf]
      %v797 = vld [vmem:[%s251 + $0x40] sm:$0xf]
      %v798 = vld [vmem:[%s251 + $0x44] sm:$0xf]
      %v799 = vld [vmem:[%s251 + $0x48] sm:$0x1]
      %s800 = scalar_lea.vmem %s1, 8
      %v801 = vld [vmem:[%s800] sm:$0x3]
      %v819 = vunpack.c.l.b16 %v783
      %v820 = vunpack.c.l.b16 %v784
      %v821 = vunpack.c.l.b16 %v785
      %v822 = vunpack.c.l.b16 %v786
      %v823 = vunpack.c.l.b16 %v787
      %v824 = vunpack.c.l.b16 %v788
      %v825 = vunpack.c.l.b16 %v789
      %v826 = vunpack.c.l.b16 %v790
      %v827 = vunpack.c.l.b16 %v791
      %v828 = vunpack.c.l.b16 %v792
      %v829 = vunpack.c.l.b16 %v793
      %v830 = vunpack.c.l.b16 %v794
      %v831 = vunpack.c.l.b16 %v795
      %v832 = vunpack.c.l.b16 %v796
      %v833 = vunpack.c.l.b16 %v797
      %v834 = vunpack.c.l.b16 %v798
      %v835 = vunpack.c.l.b16 %v799
      %v836 = vpack.c.b16 %v820, %v819
      %v837 = vpack.c.b16 %v822, %v821
      %v838 = vpack.c.b16 %v824, %v823
      %v839 = vpack.c.b16 %v826, %v825
      %v840 = vpack.c.b16 %v828, %v827
      %v841 = vpack.c.b16 %v830, %v829
      %v842 = vpack.c.b16 %v832, %v831
      %v843 = vpack.c.b16 %v834, %v833
      %v844 = vpack.c.b16 %v835, %v835
      %v846 = vshrl.u32 %v836, 16
      %v848 = vshll.u32 %v836, 16
      %v850 = vrot.slane %v848, 1
      %v851 = vor.u32 %v846, %v850
      %v853 = vshll.u32 %v837, 16
      %v855 = vrot.slane %v853, 1
      %v856 = vsel %vm572, %v851, %v855
      %v857 = vshrl.u32 %v837, 16
      %v859 = vor.u32 %v857, %v855
      %v861 = vshll.u32 %v838, 16
      %v863 = vrot.slane %v861, 1
      %v864 = vsel %vm572, %v859, %v863
      %v865 = vshrl.u32 %v838, 16
      %v867 = vor.u32 %v865, %v863
      %v869 = vshll.u32 %v839, 16
      %v871 = vrot.slane %v869, 1
      %v872 = vsel %vm572, %v867, %v871
      %v873 = vshrl.u32 %v839, 16
      %v875 = vor.u32 %v873, %v871
      %v877 = vshll.u32 %v840, 16
      %v879 = vrot.slane %v877, 1
      %v880 = vsel %vm572, %v875, %v879
      %v881 = vshrl.u32 %v840, 16
      %v883 = vor.u32 %v881, %v879
      %v885 = vshll.u32 %v841, 16
      %v887 = vrot.slane %v885, 1
      %v888 = vsel %vm572, %v883, %v887
      %v889 = vshrl.u32 %v841, 16
      %v891 = vor.u32 %v889, %v887
      %v893 = vshll.u32 %v842, 16
      %v895 = vrot.slane %v893, 1
      %v896 = vsel %vm572, %v891, %v895
      %v897 = vshrl.u32 %v842, 16
      %v899 = vor.u32 %v897, %v895
      %v901 = vshll.u32 %v843, 16
      %v903 = vrot.slane %v901, 1
      %v904 = vsel %vm572, %v899, %v903
      %v905 = vshrl.u32 %v843, 16
      %v907 = vor.u32 %v905, %v903
      %v909 = vshll.u32 %v844, 16
      %v911 = vrot.slane %v909, 1
      %v912 = vsel %vm572, %v907, %v911
      %v914 = vsel %vm641, %v856, 0
      %v917 = vsel %vm641, %v864, 0
      %v920 = vsel %vm641, %v872, 0
      %v923 = vsel %vm641, %v880, 0
      %v926 = vsel %vm641, %v888, 0
      %v929 = vsel %vm641, %v896, 0
      %v932 = vsel %vm641, %v904, 0
      %v935 = vsel %vm641, %v912, 0
      %v938 = vsel %vm666, %v801, 0
      %940 = vmatprep.subr.bf16.mxu0 0
      %941 = vmatpush1.bf16.msra.mxu0 %v938
      %942 = vmatprep.subr.bf16.mxu0 0
      %943 = vmatpush1.bf16.msra.mxu0 0
      %944 = vmatprep.subr.bf16.mxu0 0
      %945 = vmatpush1.bf16.msra.mxu0 0
      %946 = vmatprep.subr.bf16.mxu0 0
      %947 = vmatpush1.bf16.msra.mxu0 0
      %948 = vmatprep.subr.bf16.mxu0 0
      %949 = vmatpush1.bf16.msra.mxu0 0
      %950 = vmatprep.subr.bf16.mxu0 0
      %951 = vmatpush1.bf16.msra.mxu0 0
      %952 = vmatprep.subr.bf16.mxu0 0
      %953 = vmatpush1.bf16.msra.mxu0 0
      %954 = vmatprep.subr.bf16.mxu0 0
      %955 = vmatpush1.bf16.msra.mxu0 0
      %956 = vmatprep.subr.bf16.mxu0 0
      %957 = vmatpush1.bf16.msra.mxu0 0
      %958 = vmatprep.subr.bf16.mxu0 0
      %959 = vmatpush1.bf16.msra.mxu0 0
      %960 = vmatprep.subr.bf16.mxu0 0
      %961 = vmatpush1.bf16.msra.mxu0 0
      %962 = vmatprep.subr.bf16.mxu0 0
      %963 = vmatpush1.bf16.msra.mxu0 0
      %964 = vmatprep.subr.bf16.mxu0 0
      %965 = vmatpush1.bf16.msra.mxu0 0
      %966 = vmatprep.subr.bf16.mxu0 0
      %967 = vmatpush1.bf16.msra.mxu0 0
      %968 = vmatprep.subr.bf16.mxu0 0
      %969 = vmatpush1.bf16.msra.mxu0 0
      %970 = vmatprep.subr.bf16.mxu0 0
      %971 = vmatpush1.bf16.msra.mxu0 0
      %972 = vmatprep.mubr.bf16.mxu0 0
      %973 = vmatmul.mubr.bf16.gmra.mrb[0].mxu0 %v914
      %v974 = vpop.f32.mrb[0].mxu0
      %v975 = vadd.f32 0.0, %v974
      %v976 = vpop.f32.mrb[0].mxu0
      %v977 = vpop.f32.mrb[0].mxu0
      %v978 = vadd.f32 0.0, %v977
      %v979 = vpop.f32.mrb[0].mxu0
      %980 = vmatprep.mubr.bf16.mxu0 0
      %981 = vmatmul.mubr.bf16.gmra.mrb[0].mxu0 %v917
      %v982 = vpop.f32.mrb[0].mxu0
      %v983 = vadd.f32 0.0, %v982
      %v984 = vpop.f32.mrb[0].mxu0
      %v985 = vpop.f32.mrb[0].mxu0
      %v986 = vadd.f32 0.0, %v985
      %v987 = vpop.f32.mrb[0].mxu0
      %988 = vmatprep.mubr.bf16.mxu0 0
      %989 = vmatmul.mubr.bf16.gmra.mrb[0].mxu0 %v920
      %v990 = vpop.f32.mrb[0].mxu0
      %v991 = vadd.f32 0.0, %v990
      %v992 = vpop.f32.mrb[0].mxu0
      %v993 = vpop.f32.mrb[0].mxu0
      %v994 = vadd.f32 0.0, %v993
      %v995 = vpop.f32.mrb[0].mxu0
      %996 = vmatprep.mubr.bf16.mxu0 0
      %997 = vmatmul.mubr.bf16.gmra.mrb[0].mxu0 %v923
      %v998 = vpop.f32.mrb[0].mxu0
      %v999 = vadd.f32 0.0, %v998
      %v1000 = vpop.f32.mrb[0].mxu0
      %v1001 = vpop.f32.mrb[0].mxu0
      %v1002 = vadd.f32 0.0, %v1001
      %v1003 = vpop.f32.mrb[0].mxu0
      %1004 = vmatprep.mubr.bf16.mxu0 0
      %1005 = vmatmul.mubr.bf16.gmra.mrb[0].mxu0 %v926
      %v1006 = vpop.f32.mrb[0].mxu0
      %v1007 = vadd.f32 0.0, %v1006
      %v1008 = vpop.f32.mrb[0].mxu0
      %v1009 = vpop.f32.mrb[0].mxu0
      %v1010 = vadd.f32 0.0, %v1009
      %v1011 = vpop.f32.mrb[0].mxu0
      %1012 = vmatprep.mubr.bf16.mxu0 0
      %1013 = vmatmul.mubr.bf16.gmra.mrb[0].mxu0 %v929
      %v1014 = vpop.f32.mrb[0].mxu0
      %v1015 = vadd.f32 0.0, %v1014
      %v1016 = vpop.f32.mrb[0].mxu0
      %v1017 = vpop.f32.mrb[0].mxu0
      %v1018 = vadd.f32 0.0, %v1017
      %v1019 = vpop.f32.mrb[0].mxu0
      %1020 = vmatprep.mubr.bf16.mxu0 0
      %1021 = vmatmul.mubr.bf16.gmra.mrb[0].mxu0 %v932
      %v1022 = vpop.f32.mrb[0].mxu0
      %v1023 = vadd.f32 0.0, %v1022
      %v1024 = vpop.f32.mrb[0].mxu0
      %v1025 = vpop.f32.mrb[0].mxu0
      %v1026 = vadd.f32 0.0, %v1025
      %v1027 = vpop.f32.mrb[0].mxu0
      %1028 = vmatprep.mubr.bf16.mxu0 0
      %1029 = vmatmul.mubr.bf16.gmra.mrb[0].mxu0 %v935
      %v1030 = vpop.f32.mrb[0].mxu0
      %v1031 = vadd.f32 0.0, %v1030
      %v1032 = vpop.f32.mrb[0].mxu0
      %v1033 = vpop.f32.mrb[0].mxu0
      %v1034 = vadd.f32 0.0, %v1033
      %v1035 = vpop.f32.mrb[0].mxu0
      %1036 = vdwg.mxu0
      %v1037 = vadd.f32 %v767, %v975
      %v1038 = vadd.f32 %v768, %v978
      %v1039 = vadd.f32 %v769, %v983
      %v1040 = vadd.f32 %v770, %v986
      %v1041 = vadd.f32 %v771, %v991
      %v1042 = vadd.f32 %v772, %v994
      %v1043 = vadd.f32 %v773, %v999
      %v1044 = vadd.f32 %v774, %v1002
      %v1045 = vadd.f32 %v775, %v1007
      %v1046 = vadd.f32 %v776, %v1010
      %v1047 = vadd.f32 %v777, %v1015
      %v1048 = vadd.f32 %v778, %v1018
      %v1049 = vadd.f32 %v779, %v1023
      %v1050 = vadd.f32 %v780, %v1026
      %v1051 = vadd.f32 %v781, %v1031
      %v1052 = vadd.f32 %v782, %v1034
      %v1053 = vld [vmem:[%s251 + $0x10] sm:$0xf]
      %v1054 = vld [vmem:[%s251 + $0x14] sm:$0xf]
      %v1055 = vld [vmem:[%s251 + $0x18] sm:$0xf]
      %v1056 = vld [vmem:[%s251 + $0x1c] sm:$0xf]
      %v1057 = vld [vmem:[%s251 + $0x20] sm:$0xf]
      %v1058 = vld [vmem:[%s251 + $0x24] sm:$0xf]
      %v1059 = vld [vmem:[%s251 + $0x28] sm:$0xf]
      %v1060 = vld [vmem:[%s251 + $0x2c] sm:$0xf]
      %v1061 = vld [vmem:[%s251 + $0x30] sm:$0xf]
      %v1062 = vld [vmem:[%s251 + $0x34] sm:$0xf]
      %v1063 = vld [vmem:[%s251 + $0x38] sm:$0xf]
      %v1064 = vld [vmem:[%s251 + $0x3c] sm:$0xf]
      %v1065 = vld [vmem:[%s251 + $0x40] sm:$0xf]
      %v1066 = vld [vmem:[%s251 + $0x44] sm:$0xf]
      %v1067 = vld [vmem:[%s251 + $0x48] sm:$0xf]
      %v1068 = vld [vmem:[%s251 + $0x4c] sm:$0xf]
      %v1069 = vld [vmem:[%s251 + $0x50] sm:$0x1]
      %s1070 = scalar_lea.vmem %s1, 14
      %v1071 = vld [vmem:[%s1070] sm:$0x3]
      %v1089 = vunpack.c.l.b16 %v1053
      %v1090 = vunpack.c.l.b16 %v1054
      %v1091 = vunpack.c.l.b16 %v1055
      %v1092 = vunpack.c.l.b16 %v1056
      %v1093 = vunpack.c.l.b16 %v1057
      %v1094 = vunpack.c.l.b16 %v1058
      %v1095 = vunpack.c.l.b16 %v1059
      %v1096 = vunpack.c.l.b16 %v1060
      %v1097 = vunpack.c.l.b16 %v1061
      %v1098 = vunpack.c.l.b16 %v1062
      %v1099 = vunpack.c.l.b16 %v1063
      %v1100 = vunpack.c.l.b16 %v1064
      %v1101 = vunpack.c.l.b16 %v1065
      %v1102 = vunpack.c.l.b16 %v1066
      %v1103 = vunpack.c.l.b16 %v1067
      %v1104 = vunpack.c.l.b16 %v1068
      %v1105 = vunpack.c.l.b16 %v1069
      %v1106 = vpack.c.b16 %v1090, %v1089
      %v1107 = vpack.c.b16 %v1092, %v1091
      %v1108 = vpack.c.b16 %v1094, %v1093
      %v1109 = vpack.c.b16 %v1096, %v1095
      %v1110 = vpack.c.b16 %v1098, %v1097
      %v1111 = vpack.c.b16 %v1100, %v1099
      %v1112 = vpack.c.b16 %v1102, %v1101
      %v1113 = vpack.c.b16 %v1104, %v1103
      %v1114 = vpack.c.b16 %v1105, %v1105
      %v1116 = vshrl.u32 %v1106, 16
      %v1118 = vshll.u32 %v1106, 16
      %v1120 = vrot.slane %v1118, 1
      %v1121 = vor.u32 %v1116, %v1120
      %v1123 = vshll.u32 %v1107, 16
      %v1125 = vrot.slane %v1123, 1
      %v1126 = vsel %vm572, %v1121, %v1125
      %v1127 = vshrl.u32 %v1107, 16
      %v1129 = vor.u32 %v1127, %v1125
      %v1131 = vshll.u32 %v1108, 16
      %v1133 = vrot.slane %v1131, 1
      %v1134 = vsel %vm572, %v1129, %v1133
      %v1135 = vshrl.u32 %v1108, 16
      %v1137 = vor.u32 %v1135, %v1133
      %v1139 = vshll.u32 %v1109, 16
      %v1141 = vrot.slane %v1139, 1
      %v1142 = vsel %vm572, %v1137, %v1141
      %v1143 = vshrl.u32 %v1109, 16
      %v1145 = vor.u32 %v1143, %v1141
      %v1147 = vshll.u32 %v1110, 16
      %v1149 = vrot.slane %v1147, 1
      %v1150 = vsel %vm572, %v1145, %v1149
      %v1151 = vshrl.u32 %v1110, 16
      %v1153 = vor.u32 %v1151, %v1149
      %v1155 = vshll.u32 %v1111, 16
      %v1157 = vrot.slane %v1155, 1
      %v1158 = vsel %vm572, %v1153, %v1157
      %v1159 = vshrl.u32 %v1111, 16
      %v1161 = vor.u32 %v1159, %v1157
      %v1163 = vshll.u32 %v1112, 16
      %v1165 = vrot.slane %v1163, 1
      %v1166 = vsel %vm572, %v1161, %v1165
      %v1167 = vshrl.u32 %v1112, 16
      %v1169 = vor.u32 %v1167, %v1165
      %v1171 = vshll.u32 %v1113, 16
      %v1173 = vrot.slane %v1171, 1
      %v1174 = vsel %vm572, %v1169, %v1173
      %v1175 = vshrl.u32 %v1113, 16
      %v1177 = vor.u32 %v1175, %v1173
      %v1179 = vshll.u32 %v1114, 16
      %v1181 = vrot.slane %v1179, 1
      %v1182 = vsel %vm572, %v1177, %v1181
      %v1184 = vsel %vm641, %v1126, 0
      %v1187 = vsel %vm641, %v1134, 0
      %v1190 = vsel %vm641, %v1142, 0
      %v1193 = vsel %vm641, %v1150, 0
      %v1196 = vsel %vm641, %v1158, 0
      %v1199 = vsel %vm641, %v1166, 0
      %v1202 = vsel %vm641, %v1174, 0
      %v1205 = vsel %vm641, %v1182, 0
      %v1208 = vsel %vm666, %v1071, 0
      %1210 = vmatprep.subr.bf16.mxu0 0
      %1211 = vmatpush1.bf16.msra.mxu0 %v1208
      %1212 = vmatprep.subr.bf16.mxu0 0
      %1213 = vmatpush1.bf16.msra.mxu0 0
      %1214 = vmatprep.subr.bf16.mxu0 0
      %1215 = vmatpush1.bf16.msra.mxu0 0
      %1216 = vmatprep.subr.bf16.mxu0 0
      %1217 = vmatpush1.bf16.msra.mxu0 0
      %1218 = vmatprep.subr.bf16.mxu0 0
      %1219 = vmatpush1.bf16.msra.mxu0 0
      %1220 = vmatprep.subr.bf16.mxu0 0
      %1221 = vmatpush1.bf16.msra.mxu0 0
      %1222 = vmatprep.subr.bf16.mxu0 0
      %1223 = vmatpush1.bf16.msra.mxu0 0
      %1224 = vmatprep.subr.bf16.mxu0 0
      %1225 = vmatpush1.bf16.msra.mxu0 0
      %1226 = vmatprep.subr.bf16.mxu0 0
      %1227 = vmatpush1.bf16.msra.mxu0 0
      %1228 = vmatprep.subr.bf16.mxu0 0
      %1229 = vmatpush1.bf16.msra.mxu0 0
      %1230 = vmatprep.subr.bf16.mxu0 0
      %1231 = vmatpush1.bf16.msra.mxu0 0
      %1232 = vmatprep.subr.bf16.mxu0 0
      %1233 = vmatpush1.bf16.msra.mxu0 0
      %1234 = vmatprep.subr.bf16.mxu0 0
      %1235 = vmatpush1.bf16.msra.mxu0 0
      %1236 = vmatprep.subr.bf16.mxu0 0
      %1237 = vmatpush1.bf16.msra.mxu0 0
      %1238 = vmatprep.subr.bf16.mxu0 0
      %1239 = vmatpush1.bf16.msra.mxu0 0
      %1240 = vmatprep.subr.bf16.mxu0 0
      %1241 = vmatpush1.bf16.msra.mxu0 0
      %1242 = vmatprep.mubr.bf16.mxu0 0
      %1243 = vmatmul.mubr.bf16.gmra.mrb[0].mxu0 %v1184
      %v1244 = vpop.f32.mrb[0].mxu0
      %v1245 = vadd.f32 0.0, %v1244
      %v1246 = vpop.f32.mrb[0].mxu0
      %v1247 = vpop.f32.mrb[0].mxu0
      %v1248 = vadd.f32 0.0, %v1247
      %v1249 = vpop.f32.mrb[0].mxu0
      %1250 = vmatprep.mubr.bf16.mxu0 0
      %1251 = vmatmul.mubr.bf16.gmra.mrb[0].mxu0 %v1187
      %v1252 = vpop.f32.mrb[0].mxu0
      %v1253 = vadd.f32 0.0, %v1252
      %v1254 = vpop.f32.mrb[0].mxu0
      %v1255 = vpop.f32.mrb[0].mxu0
      %v1256 = vadd.f32 0.0, %v1255
      %v1257 = vpop.f32.mrb[0].mxu0
      %1258 = vmatprep.mubr.bf16.mxu0 0
      %1259 = vmatmul.mubr.bf16.gmra.mrb[0].mxu0 %v1190
      %v1260 = vpop.f32.mrb[0].mxu0
      %v1261 = vadd.f32 0.0, %v1260
      %v1262 = vpop.f32.mrb[0].mxu0
      %v1263 = vpop.f32.mrb[0].mxu0
      %v1264 = vadd.f32 0.0, %v1263
      %v1265 = vpop.f32.mrb[0].mxu0
      %1266 = vmatprep.mubr.bf16.mxu0 0
      %1267 = vmatmul.mubr.bf16.gmra.mrb[0].mxu0 %v1193
      %v1268 = vpop.f32.mrb[0].mxu0
      %v1269 = vadd.f32 0.0, %v1268
      %v1270 = vpop.f32.mrb[0].mxu0
      %v1271 = vpop.f32.mrb[0].mxu0
      %v1272 = vadd.f32 0.0, %v1271
      %v1273 = vpop.f32.mrb[0].mxu0
      %1274 = vmatprep.mubr.bf16.mxu0 0
      %1275 = vmatmul.mubr.bf16.gmra.mrb[0].mxu0 %v1196
      %v1276 = vpop.f32.mrb[0].mxu0
      %v1277 = vadd.f32 0.0, %v1276
      %v1278 = vpop.f32.mrb[0].mxu0
      %v1279 = vpop.f32.mrb[0].mxu0
      %v1280 = vadd.f32 0.0, %v1279
      %v1281 = vpop.f32.mrb[0].mxu0
      %1282 = vmatprep.mubr.bf16.mxu0 0
      %1283 = vmatmul.mubr.bf16.gmra.mrb[0].mxu0 %v1199
      %v1284 = vpop.f32.mrb[0].mxu0
      %v1285 = vadd.f32 0.0, %v1284
      %v1286 = vpop.f32.mrb[0].mxu0
      %v1287 = vpop.f32.mrb[0].mxu0
      %v1288 = vadd.f32 0.0, %v1287
      %v1289 = vpop.f32.mrb[0].mxu0
      %1290 = vmatprep.mubr.bf16.mxu0 0
      %1291 = vmatmul.mubr.bf16.gmra.mrb[0].mxu0 %v1202
      %v1292 = vpop.f32.mrb[0].mxu0
      %v1293 = vadd.f32 0.0, %v1292
      %v1294 = vpop.f32.mrb[0].mxu0
      %v1295 = vpop.f32.mrb[0].mxu0
      %v1296 = vadd.f32 0.0, %v1295
      %v1297 = vpop.f32.mrb[0].mxu0
      %1298 = vmatprep.mubr.bf16.mxu0 0
      %1299 = vmatmul.mubr.bf16.gmra.mrb[0].mxu0 %v1205
      %v1300 = vpop.f32.mrb[0].mxu0
      %v1301 = vadd.f32 0.0, %v1300
      %v1302 = vpop.f32.mrb[0].mxu0
      %v1303 = vpop.f32.mrb[0].mxu0
      %v1304 = vadd.f32 0.0, %v1303
      %v1305 = vpop.f32.mrb[0].mxu0
      %1306 = vdwg.mxu0
      %v1307 = vadd.f32 %v1037, %v1245
      %v1308 = vadd.f32 %v1038, %v1248
      %v1309 = vadd.f32 %v1039, %v1253
      %v1310 = vadd.f32 %v1040, %v1256
      %v1311 = vadd.f32 %v1041, %v1261
      %v1312 = vadd.f32 %v1042, %v1264
      %v1313 = vadd.f32 %v1043, %v1269
      %v1314 = vadd.f32 %v1044, %v1272
      %v1315 = vadd.f32 %v1045, %v1277
      %v1316 = vadd.f32 %v1046, %v1280
      %v1317 = vadd.f32 %v1047, %v1285
      %v1318 = vadd.f32 %v1048, %v1288
      %v1319 = vadd.f32 %v1049, %v1293
      %v1320 = vadd.f32 %v1050, %v1296
      %v1321 = vadd.f32 %v1051, %v1301
      %v1322 = vadd.f32 %v1052, %v1304
      %v1323 = vld [vmem:[%s251] sm:$0xf]
      %v1324 = vld [vmem:[%s251 + $0x4] sm:$0xf]
      %v1325 = vld [vmem:[%s251 + $0x8] sm:$0xf]
      %v1326 = vld [vmem:[%s251 + $0xc] sm:$0xf]
      %v1327 = vld [vmem:[%s251 + $0x10] sm:$0xf]
      %v1328 = vld [vmem:[%s251 + $0x14] sm:$0xf]
      %v1329 = vld [vmem:[%s251 + $0x18] sm:$0xf]
      %v1330 = vld [vmem:[%s251 + $0x1c] sm:$0xf]
      %v1331 = vld [vmem:[%s251 + $0x20] sm:$0xf]
      %v1332 = vld [vmem:[%s251 + $0x24] sm:$0xf]
      %v1333 = vld [vmem:[%s251 + $0x28] sm:$0xf]
      %v1334 = vld [vmem:[%s251 + $0x2c] sm:$0xf]
      %v1335 = vld [vmem:[%s251 + $0x30] sm:$0xf]
      %v1336 = vld [vmem:[%s251 + $0x34] sm:$0xf]
      %v1337 = vld [vmem:[%s251 + $0x38] sm:$0xf]
      %v1338 = vld [vmem:[%s251 + $0x3c] sm:$0xf]
      %v1339 = vld [vmem:[%s1] sm:$0x3]
      %v1340 = vld [vmem:[%s251 + $0x40] sm:$0xf]
      %v1341 = vld [vmem:[%s251 + $0x44] sm:$0xf]
      %s1342 = scalar_lea.vmem %s1, 6
      %v1343 = vld [vmem:[%s1342] sm:$0x3]
      %v1360 = vunpack.c.l.b16 %v1325
      %v1361 = vunpack.c.l.b16 %v1326
      %v1362 = vunpack.c.l.b16 %v1327
      %v1363 = vunpack.c.l.b16 %v1328
      %v1364 = vunpack.c.l.b16 %v1329
      %v1365 = vunpack.c.l.b16 %v1330
      %v1366 = vunpack.c.l.b16 %v1331
      %v1367 = vunpack.c.l.b16 %v1332
      %v1368 = vunpack.c.l.b16 %v1333
      %v1369 = vunpack.c.l.b16 %v1334
      %v1370 = vunpack.c.l.b16 %v1335
      %v1371 = vunpack.c.l.b16 %v1336
      %v1372 = vunpack.c.l.b16 %v1337
      %v1373 = vunpack.c.l.b16 %v1338
      %v1374 = vunpack.c.l.b16 %v1340
      %v1375 = vunpack.c.l.b16 %v1341
      %v1376 = vpack.c.b16 %v1361, %v1360
      %v1377 = vpack.c.b16 %v1363, %v1362
      %v1378 = vpack.c.b16 %v1365, %v1364
      %v1379 = vpack.c.b16 %v1367, %v1366
      %v1380 = vpack.c.b16 %v1369, %v1368
      %v1381 = vpack.c.b16 %v1371, %v1370
      %v1382 = vpack.c.b16 %v1373, %v1372
      %v1383 = vpack.c.b16 %v1375, %v1374
      %v1385 = vsel %vm641, %v1376, 0
      %v1388 = vsel %vm641, %v1377, 0
      %v1391 = vsel %vm641, %v1378, 0
      %v1394 = vsel %vm641, %v1379, 0
      %v1397 = vsel %vm641, %v1380, 0
      %v1400 = vsel %vm641, %v1381, 0
      %v1403 = vsel %vm641, %v1382, 0
      %v1406 = vsel %vm641, %v1383, 0
      %v1409 = vsel %vm666, %v1343, 0
      %1411 = vmatprep.subr.bf16.mxu0 0
      %1412 = vmatpush1.bf16.msra.mxu0 %v1409
      %1413 = vmatprep.subr.bf16.mxu0 0
      %1414 = vmatpush1.bf16.msra.mxu0 0
      %1415 = vmatprep.subr.bf16.mxu0 0
      %1416 = vmatpush1.bf16.msra.mxu0 0
      %1417 = vmatprep.subr.bf16.mxu0 0
      %1418 = vmatpush1.bf16.msra.mxu0 0
      %1419 = vmatprep.subr.bf16.mxu0 0
      %1420 = vmatpush1.bf16.msra.mxu0 0
      %1421 = vmatprep.subr.bf16.mxu0 0
      %1422 = vmatpush1.bf16.msra.mxu0 0
      %1423 = vmatprep.subr.bf16.mxu0 0
      %1424 = vmatpush1.bf16.msra.mxu0 0
      %1425 = vmatprep.subr.bf16.mxu0 0
      %1426 = vmatpush1.bf16.msra.mxu0 0
      %1427 = vmatprep.subr.bf16.mxu0 0
      %1428 = vmatpush1.bf16.msra.mxu0 0
      %1429 = vmatprep.subr.bf16.mxu0 0
      %1430 = vmatpush1.bf16.msra.mxu0 0
      %1431 = vmatprep.subr.bf16.mxu0 0
      %1432 = vmatpush1.bf16.msra.mxu0 0
      %1433 = vmatprep.subr.bf16.mxu0 0
      %1434 = vmatpush1.bf16.msra.mxu0 0
      %1435 = vmatprep.subr.bf16.mxu0 0
      %1436 = vmatpush1.bf16.msra.mxu0 0
      %1437 = vmatprep.subr.bf16.mxu0 0
      %1438 = vmatpush1.bf16.msra.mxu0 0
      %1439 = vmatprep.subr.bf16.mxu0 0
      %1440 = vmatpush1.bf16.msra.mxu0 0
      %1441 = vmatprep.subr.bf16.mxu0 0
      %1442 = vmatpush1.bf16.msra.mxu0 0
      %1443 = vmatprep.mubr.bf16.mxu0 0
      %1444 = vmatmul.mubr.bf16.gmra.mrb[0].mxu0 %v1385
      %v1445 = vpop.f32.mrb[0].mxu0
      %v1446 = vadd.f32 0.0, %v1445
      %v1447 = vpop.f32.mrb[0].mxu0
      %v1448 = vpop.f32.mrb[0].mxu0
      %v1449 = vadd.f32 0.0, %v1448
      %v1450 = vpop.f32.mrb[0].mxu0
      %1451 = vmatprep.mubr.bf16.mxu0 0
      %1452 = vmatmul.mubr.bf16.gmra.mrb[0].mxu0 %v1388
      %v1453 = vpop.f32.mrb[0].mxu0
      %v1454 = vadd.f32 0.0, %v1453
      %v1455 = vpop.f32.mrb[0].mxu0
      %v1456 = vpop.f32.mrb[0].mxu0
      %v1457 = vadd.f32 0.0, %v1456
      %v1458 = vpop.f32.mrb[0].mxu0
      %1459 = vmatprep.mubr.bf16.mxu0 0
      %1460 = vmatmul.mubr.bf16.gmra.mrb[0].mxu0 %v1391
      %v1461 = vpop.f32.mrb[0].mxu0
      %v1462 = vadd.f32 0.0, %v1461
      %v1463 = vpop.f32.mrb[0].mxu0
      %v1464 = vpop.f32.mrb[0].mxu0
      %v1465 = vadd.f32 0.0, %v1464
      %v1466 = vpop.f32.mrb[0].mxu0
      %1467 = vmatprep.mubr.bf16.mxu0 0
      %1468 = vmatmul.mubr.bf16.gmra.mrb[0].mxu0 %v1394
      %v1469 = vpop.f32.mrb[0].mxu0
      %v1470 = vadd.f32 0.0, %v1469
      %v1471 = vpop.f32.mrb[0].mxu0
      %v1472 = vpop.f32.mrb[0].mxu0
      %v1473 = vadd.f32 0.0, %v1472
      %v1474 = vpop.f32.mrb[0].mxu0
      %1475 = vmatprep.mubr.bf16.mxu0 0
      %1476 = vmatmul.mubr.bf16.gmra.mrb[0].mxu0 %v1397
      %v1477 = vpop.f32.mrb[0].mxu0
      %v1478 = vadd.f32 0.0, %v1477
      %v1479 = vpop.f32.mrb[0].mxu0
      %v1480 = vpop.f32.mrb[0].mxu0
      %v1481 = vadd.f32 0.0, %v1480
      %v1482 = vpop.f32.mrb[0].mxu0
      %1483 = vmatprep.mubr.bf16.mxu0 0
      %1484 = vmatmul.mubr.bf16.gmra.mrb[0].mxu0 %v1400
      %v1485 = vpop.f32.mrb[0].mxu0
      %v1486 = vadd.f32 0.0, %v1485
      %v1487 = vpop.f32.mrb[0].mxu0
      %v1488 = vpop.f32.mrb[0].mxu0
      %v1489 = vadd.f32 0.0, %v1488
      %v1490 = vpop.f32.mrb[0].mxu0
      %1491 = vmatprep.mubr.bf16.mxu0 0
      %1492 = vmatmul.mubr.bf16.gmra.mrb[0].mxu0 %v1403
      %v1493 = vpop.f32.mrb[0].mxu0
      %v1494 = vadd.f32 0.0, %v1493
      %v1495 = vpop.f32.mrb[0].mxu0
      %v1496 = vpop.f32.mrb[0].mxu0
      %v1497 = vadd.f32 0.0, %v1496
      %v1498 = vpop.f32.mrb[0].mxu0
      %1499 = vmatprep.mubr.bf16.mxu0 0
      %1500 = vmatmul.mubr.bf16.gmra.mrb[0].mxu0 %v1406
      %v1501 = vpop.f32.mrb[0].mxu0
      %v1502 = vadd.f32 0.0, %v1501
      %v1503 = vpop.f32.mrb[0].mxu0
      %v1504 = vpop.f32.mrb[0].mxu0
      %v1505 = vadd.f32 0.0, %v1504
      %v1506 = vpop.f32.mrb[0].mxu0
      %1507 = vdwg.mxu0
      %v1510 = vunpack.c.l.b16 %v1323
      %v1511 = vunpack.c.l.b16 %v1324
      %v1512 = vpack.c.b16 %v1511, %v1510
      %v1514 = vsel %vm641, %v1512, 0
      %v1517 = vsel %vm666, %v1339, 0
      %1519 = vmatprep.subr.bf16.mxu0 0
      %1520 = vmatpush1.bf16.msra.mxu0 %v1517
      %1521 = vmatprep.subr.bf16.mxu0 0
      %1522 = vmatpush1.bf16.msra.mxu0 0
      %1523 = vmatprep.subr.bf16.mxu0 0
      %1524 = vmatpush1.bf16.msra.mxu0 0
      %1525 = vmatprep.subr.bf16.mxu0 0
      %1526 = vmatpush1.bf16.msra.mxu0 0
      %1527 = vmatprep.subr.bf16.mxu0 0
      %1528 = vmatpush1.bf16.msra.mxu0 0
      %1529 = vmatprep.subr.bf16.mxu0 0
      %1530 = vmatpush1.bf16.msra.mxu0 0
      %1531 = vmatprep.subr.bf16.mxu0 0
      %1532 = vmatpush1.bf16.msra.mxu0 0
      %1533 = vmatprep.subr.bf16.mxu0 0
      %1534 = vmatpush1.bf16.msra.mxu0 0
      %1535 = vmatprep.subr.bf16.mxu0 0
      %1536 = vmatpush1.bf16.msra.mxu0 0
      %1537 = vmatprep.subr.bf16.mxu0 0
      %1538 = vmatpush1.bf16.msra.mxu0 0
      %1539 = vmatprep.subr.bf16.mxu0 0
      %1540 = vmatpush1.bf16.msra.mxu0 0
      %1541 = vmatprep.subr.bf16.mxu0 0
      %1542 = vmatpush1.bf16.msra.mxu0 0
      %1543 = vmatprep.subr.bf16.mxu0 0
      %1544 = vmatpush1.bf16.msra.mxu0 0
      %1545 = vmatprep.subr.bf16.mxu0 0
      %1546 = vmatpush1.bf16.msra.mxu0 0
      %1547 = vmatprep.subr.bf16.mxu0 0
      %1548 = vmatpush1.bf16.msra.mxu0 0
      %1549 = vmatprep.subr.bf16.mxu0 0
      %1550 = vmatpush1.bf16.msra.mxu0 0
      %1551 = vmatprep.mubr.bf16.mxu0 0
      %1552 = vmatmul.mubr.bf16.gmra.mrb[0].mxu0 %v1514
      %v1553 = vpop.f32.mrb[0].mxu0
      %v1554 = vadd.f32 %v1446, %v1553
      %v1555 = vpop.f32.mrb[0].mxu0
      %v1556 = vpop.f32.mrb[0].mxu0
      %v1557 = vadd.f32 %v1449, %v1556
      %v1558 = vpop.f32.mrb[0].mxu0
      %1559 = vmatprep.mubr.bf16.mxu0 0
      %1560 = vmatmul.mubr.bf16.gmra.mrb[0].mxu0 %v1385
      %v1561 = vpop.f32.mrb[0].mxu0
      %v1562 = vadd.f32 %v1454, %v1561
      %v1563 = vpop.f32.mrb[0].mxu0
      %v1564 = vpop.f32.mrb[0].mxu0
      %v1565 = vadd.f32 %v1457, %v1564
      %v1566 = vpop.f32.mrb[0].mxu0
      %1567 = vmatprep.mubr.bf16.mxu0 0
      %1568 = vmatmul.mubr.bf16.gmra.mrb[0].mxu0 %v1388
      %v1569 = vpop.f32.mrb[0].mxu0
      %v1570 = vadd.f32 %v1462, %v1569
      %v1571 = vpop.f32.mrb[0].mxu0
      %v1572 = vpop.f32.mrb[0].mxu0
      %v1573 = vadd.f32 %v1465, %v1572
      %v1574 = vpop.f32.mrb[0].mxu0
      %1575 = vmatprep.mubr.bf16.mxu0 0
      %1576 = vmatmul.mubr.bf16.gmra.mrb[0].mxu0 %v1391
      %v1577 = vpop.f32.mrb[0].mxu0
      %v1578 = vadd.f32 %v1470, %v1577
      %v1579 = vpop.f32.mrb[0].mxu0
      %v1580 = vpop.f32.mrb[0].mxu0
      %v1581 = vadd.f32 %v1473, %v1580
      %v1582 = vpop.f32.mrb[0].mxu0
      %1583 = vmatprep.mubr.bf16.mxu0 0
      %1584 = vmatmul.mubr.bf16.gmra.mrb[0].mxu0 %v1394
      %v1585 = vpop.f32.mrb[0].mxu0
      %v1586 = vadd.f32 %v1478, %v1585
      %v1587 = vpop.f32.mrb[0].mxu0
      %v1588 = vpop.f32.mrb[0].mxu0
      %v1589 = vadd.f32 %v1481, %v1588
      %v1590 = vpop.f32.mrb[0].mxu0
      %1591 = vmatprep.mubr.bf16.mxu0 0
      %1592 = vmatmul.mubr.bf16.gmra.mrb[0].mxu0 %v1397
      %v1593 = vpop.f32.mrb[0].mxu0
      %v1594 = vadd.f32 %v1486, %v1593
      %v1595 = vpop.f32.mrb[0].mxu0
      %v1596 = vpop.f32.mrb[0].mxu0
      %v1597 = vadd.f32 %v1489, %v1596
      %v1598 = vpop.f32.mrb[0].mxu0
      %1599 = vmatprep.mubr.bf16.mxu0 0
      %1600 = vmatmul.mubr.bf16.gmra.mrb[0].mxu0 %v1400
      %v1601 = vpop.f32.mrb[0].mxu0
      %v1602 = vadd.f32 %v1494, %v1601
      %v1603 = vpop.f32.mrb[0].mxu0
      %v1604 = vpop.f32.mrb[0].mxu0
      %v1605 = vadd.f32 %v1497, %v1604
      %v1606 = vpop.f32.mrb[0].mxu0
      %1607 = vmatprep.mubr.bf16.mxu0 0
      %1608 = vmatmul.mubr.bf16.gmra.mrb[0].mxu0 %v1403
      %v1609 = vpop.f32.mrb[0].mxu0
      %v1610 = vadd.f32 %v1502, %v1609
      %v1611 = vpop.f32.mrb[0].mxu0
      %v1612 = vpop.f32.mrb[0].mxu0
      %v1613 = vadd.f32 %v1505, %v1612
      %v1614 = vpop.f32.mrb[0].mxu0
      %1615 = vdwg.mxu0
      %v1616 = vld [vmem:[%s251 + $0x10] sm:$0xf]
      %v1617 = vld [vmem:[%s251 + $0x14] sm:$0xf]
      %v1618 = vld [vmem:[%s251 + $0x18] sm:$0xf]
      %v1619 = vld [vmem:[%s251 + $0x1c] sm:$0xf]
      %v1620 = vld [vmem:[%s251 + $0x20] sm:$0xf]
      %v1621 = vld [vmem:[%s251 + $0x24] sm:$0xf]
      %v1622 = vld [vmem:[%s251 + $0x28] sm:$0xf]
      %v1623 = vld [vmem:[%s251 + $0x2c] sm:$0xf]
      %v1624 = vld [vmem:[%s251 + $0x30] sm:$0xf]
      %v1625 = vld [vmem:[%s251 + $0x34] sm:$0xf]
      %v1626 = vld [vmem:[%s251 + $0x38] sm:$0xf]
      %v1627 = vld [vmem:[%s251 + $0x3c] sm:$0xf]
      %v1628 = vld [vmem:[%s251 + $0x40] sm:$0xf]
      %v1629 = vld [vmem:[%s251 + $0x44] sm:$0xf]
      %v1630 = vld [vmem:[%s251 + $0x48] sm:$0xf]
      %v1631 = vld [vmem:[%s251 + $0x4c] sm:$0xf]
      %s1632 = scalar_lea.vmem %s1, 12
      %v1633 = vld [vmem:[%s1632] sm:$0x3]
      %v1650 = vunpack.c.l.b16 %v1616
      %v1651 = vunpack.c.l.b16 %v1617
      %v1652 = vunpack.c.l.b16 %v1618
      %v1653 = vunpack.c.l.b16 %v1619
      %v1654 = vunpack.c.l.b16 %v1620
      %v1655 = vunpack.c.l.b16 %v1621
      %v1656 = vunpack.c.l.b16 %v1622
      %v1657 = vunpack.c.l.b16 %v1623
      %v1658 = vunpack.c.l.b16 %v1624
      %v1659 = vunpack.c.l.b16 %v1625
      %v1660 = vunpack.c.l.b16 %v1626
      %v1661 = vunpack.c.l.b16 %v1627
      %v1662 = vunpack.c.l.b16 %v1628
      %v1663 = vunpack.c.l.b16 %v1629
      %v1664 = vunpack.c.l.b16 %v1630
      %v1665 = vunpack.c.l.b16 %v1631
      %v1666 = vpack.c.b16 %v1651, %v1650
      %v1667 = vpack.c.b16 %v1653, %v1652
      %v1668 = vpack.c.b16 %v1655, %v1654
      %v1669 = vpack.c.b16 %v1657, %v1656
      %v1670 = vpack.c.b16 %v1659, %v1658
      %v1671 = vpack.c.b16 %v1661, %v1660
      %v1672 = vpack.c.b16 %v1663, %v1662
      %v1673 = vpack.c.b16 %v1665, %v1664
      %v1675 = vsel %vm641, %v1666, 0
      %v1678 = vsel %vm641, %v1667, 0
      %v1681 = vsel %vm641, %v1668, 0
      %v1684 = vsel %vm641, %v1669, 0
      %v1687 = vsel %vm641, %v1670, 0
      %v1690 = vsel %vm641, %v1671, 0
      %v1693 = vsel %vm641, %v1672, 0
      %v1696 = vsel %vm641, %v1673, 0
      %v1699 = vsel %vm666, %v1633, 0
      %1701 = vmatprep.subr.bf16.mxu0 0
      %1702 = vmatpush1.bf16.msra.mxu0 %v1699
      %1703 = vmatprep.subr.bf16.mxu0 0
      %1704 = vmatpush1.bf16.msra.mxu0 0
      %1705 = vmatprep.subr.bf16.mxu0 0
      %1706 = vmatpush1.bf16.msra.mxu0 0
      %1707 = vmatprep.subr.bf16.mxu0 0
      %1708 = vmatpush1.bf16.msra.mxu0 0
      %1709 = vmatprep.subr.bf16.mxu0 0
      %1710 = vmatpush1.bf16.msra.mxu0 0
      %1711 = vmatprep.subr.bf16.mxu0 0
      %1712 = vmatpush1.bf16.msra.mxu0 0
      %1713 = vmatprep.subr.bf16.mxu0 0
      %1714 = vmatpush1.bf16.msra.mxu0 0
      %1715 = vmatprep.subr.bf16.mxu0 0
      %1716 = vmatpush1.bf16.msra.mxu0 0
      %1717 = vmatprep.subr.bf16.mxu0 0
      %1718 = vmatpush1.bf16.msra.mxu0 0
      %1719 = vmatprep.subr.bf16.mxu0 0
      %1720 = vmatpush1.bf16.msra.mxu0 0
      %1721 = vmatprep.subr.bf16.mxu0 0
      %1722 = vmatpush1.bf16.msra.mxu0 0
      %1723 = vmatprep.subr.bf16.mxu0 0
      %1724 = vmatpush1.bf16.msra.mxu0 0
      %1725 = vmatprep.subr.bf16.mxu0 0
      %1726 = vmatpush1.bf16.msra.mxu0 0
      %1727 = vmatprep.subr.bf16.mxu0 0
      %1728 = vmatpush1.bf16.msra.mxu0 0
      %1729 = vmatprep.subr.bf16.mxu0 0
      %1730 = vmatpush1.bf16.msra.mxu0 0
      %1731 = vmatprep.subr.bf16.mxu0 0
      %1732 = vmatpush1.bf16.msra.mxu0 0
      %1733 = vmatprep.mubr.bf16.mxu0 0
      %1734 = vmatmul.mubr.bf16.gmra.mrb[0].mxu0 %v1675
      %v1735 = vpop.f32.mrb[0].mxu0
      %v1736 = vadd.f32 0.0, %v1735
      %v1737 = vpop.f32.mrb[0].mxu0
      %v1738 = vpop.f32.mrb[0].mxu0
      %v1739 = vadd.f32 0.0, %v1738
      %v1740 = vpop.f32.mrb[0].mxu0
      %1741 = vmatprep.mubr.bf16.mxu0 0
      %1742 = vmatmul.mubr.bf16.gmra.mrb[0].mxu0 %v1678
      %v1743 = vpop.f32.mrb[0].mxu0
      %v1744 = vadd.f32 0.0, %v1743
      %v1745 = vpop.f32.mrb[0].mxu0
      %v1746 = vpop.f32.mrb[0].mxu0
      %v1747 = vadd.f32 0.0, %v1746
      %v1748 = vpop.f32.mrb[0].mxu0
      %1749 = vmatprep.mubr.bf16.mxu0 0
      %1750 = vmatmul.mubr.bf16.gmra.mrb[0].mxu0 %v1681
      %v1751 = vpop.f32.mrb[0].mxu0
      %v1752 = vadd.f32 0.0, %v1751
      %v1753 = vpop.f32.mrb[0].mxu0
      %v1754 = vpop.f32.mrb[0].mxu0
      %v1755 = vadd.f32 0.0, %v1754
      %v1756 = vpop.f32.mrb[0].mxu0
      %1757 = vmatprep.mubr.bf16.mxu0 0
      %1758 = vmatmul.mubr.bf16.gmra.mrb[0].mxu0 %v1684
      %v1759 = vpop.f32.mrb[0].mxu0
      %v1760 = vadd.f32 0.0, %v1759
      %v1761 = vpop.f32.mrb[0].mxu0
      %v1762 = vpop.f32.mrb[0].mxu0
      %v1763 = vadd.f32 0.0, %v1762
      %v1764 = vpop.f32.mrb[0].mxu0
      %1765 = vmatprep.mubr.bf16.mxu0 0
      %1766 = vmatmul.mubr.bf16.gmra.mrb[0].mxu0 %v1687
      %v1767 = vpop.f32.mrb[0].mxu0
      %v1768 = vadd.f32 0.0, %v1767
      %v1769 = vpop.f32.mrb[0].mxu0
      %v1770 = vpop.f32.mrb[0].mxu0
      %v1771 = vadd.f32 0.0, %v1770
      %v1772 = vpop.f32.mrb[0].mxu0
      %1773 = vmatprep.mubr.bf16.mxu0 0
      %1774 = vmatmul.mubr.bf16.gmra.mrb[0].mxu0 %v1690
      %v1775 = vpop.f32.mrb[0].mxu0
      %v1776 = vadd.f32 0.0, %v1775
      %v1777 = vpop.f32.mrb[0].mxu0
      %v1778 = vpop.f32.mrb[0].mxu0
      %v1779 = vadd.f32 0.0, %v1778
      %v1780 = vpop.f32.mrb[0].mxu0
      %1781 = vmatprep.mubr.bf16.mxu0 0
      %1782 = vmatmul.mubr.bf16.gmra.mrb[0].mxu0 %v1693
      %v1783 = vpop.f32.mrb[0].mxu0
      %v1784 = vadd.f32 0.0, %v1783
      %v1785 = vpop.f32.mrb[0].mxu0
      %v1786 = vpop.f32.mrb[0].mxu0
      %v1787 = vadd.f32 0.0, %v1786
      %v1788 = vpop.f32.mrb[0].mxu0
      %1789 = vmatprep.mubr.bf16.mxu0 0
      %1790 = vmatmul.mubr.bf16.gmra.mrb[0].mxu0 %v1696
      %v1791 = vpop.f32.mrb[0].mxu0
      %v1792 = vadd.f32 0.0, %v1791
      %v1793 = vpop.f32.mrb[0].mxu0
      %v1794 = vpop.f32.mrb[0].mxu0
      %v1795 = vadd.f32 0.0, %v1794
      %v1796 = vpop.f32.mrb[0].mxu0
      %1797 = vdwg.mxu0
      %v1798 = vadd.f32 %v1554, %v1736
      %v1799 = vadd.f32 %v1557, %v1739
      %v1800 = vadd.f32 %v1562, %v1744
      %v1801 = vadd.f32 %v1565, %v1747
      %v1802 = vadd.f32 %v1570, %v1752
      %v1803 = vadd.f32 %v1573, %v1755
      %v1804 = vadd.f32 %v1578, %v1760
      %v1805 = vadd.f32 %v1581, %v1763
      %v1806 = vadd.f32 %v1586, %v1768
      %v1807 = vadd.f32 %v1589, %v1771
      %v1808 = vadd.f32 %v1594, %v1776
      %v1809 = vadd.f32 %v1597, %v1779
      %v1810 = vadd.f32 %v1602, %v1784
      %v1811 = vadd.f32 %v1605, %v1787
      %v1812 = vadd.f32 %v1610, %v1792
      %v1813 = vadd.f32 %v1613, %v1795
      %v1814 = vsel %vm471, 1, 0
      %v1815 = vsel %vm472, 1, 0
      %v1816 = vsel %vm473, 1, 0
      %v1817 = vsel %vm474, 1, 0
      %v1818 = vsel %vm475, 1, 0
      %v1819 = vsel %vm476, 1, 0
      %v1820 = vsel %vm477, 1, 0
      %v1821 = vsel %vm478, 1, 0
      %v1822 = vsel %vm479, 1, 0
      %v1823 = vsel %vm480, 1, 0
      %v1824 = vsel %vm481, 1, 0
      %v1825 = vsel %vm482, 1, 0
      %v1826 = vsel %vm483, 1, 0
      %v1827 = vsel %vm484, 1, 0
      %v1828 = vsel %vm485, 1, 0
      %v1829 = vsel %vm486, 1, 0
      %vm1830 = vcmp.eq.s32.totalorder %v1814, 1
      %vm1831 = vcmp.eq.s32.totalorder %v1815, 1
      %vm1832 = vcmp.eq.s32.totalorder %v1816, 1
      %vm1833 = vcmp.eq.s32.totalorder %v1817, 1
      %vm1834 = vcmp.eq.s32.totalorder %v1818, 1
      %vm1835 = vcmp.eq.s32.totalorder %v1819, 1
      %vm1836 = vcmp.eq.s32.totalorder %v1820, 1
      %vm1837 = vcmp.eq.s32.totalorder %v1821, 1
      %vm1838 = vcmp.eq.s32.totalorder %v1822, 1
      %vm1839 = vcmp.eq.s32.totalorder %v1823, 1
      %vm1840 = vcmp.eq.s32.totalorder %v1824, 1
      %vm1841 = vcmp.eq.s32.totalorder %v1825, 1
      %vm1842 = vcmp.eq.s32.totalorder %v1826, 1
      %vm1843 = vcmp.eq.s32.totalorder %v1827, 1
      %vm1844 = vcmp.eq.s32.totalorder %v1828, 1
      %vm1845 = vcmp.eq.s32.totalorder %v1829, 1
      %v1846 = vsel %vm1830, %v1798, 0.0
      %v1847 = vsel %vm1831, %v1799, 0.0
      %v1848 = vsel %vm1832, %v1800, 0.0
      %v1849 = vsel %vm1833, %v1801, 0.0
      %v1850 = vsel %vm1834, %v1802, 0.0
      %v1851 = vsel %vm1835, %v1803, 0.0
      %v1852 = vsel %vm1836, %v1804, 0.0
      %v1853 = vsel %vm1837, %v1805, 0.0
      %v1854 = vsel %vm1838, %v1806, 0.0
      %v1855 = vsel %vm1839, %v1807, 0.0
      %v1856 = vsel %vm1840, %v1808, 0.0
      %v1857 = vsel %vm1841, %v1809, 0.0
      %v1858 = vsel %vm1842, %v1810, 0.0
      %v1859 = vsel %vm1843, %v1811, 0.0
      %v1860 = vsel %vm1844, %v1812, 0.0
      %v1861 = vsel %vm1845, %v1813, 0.0
      %v1862 = vadd.f32 %v1307, %v1846
      %v1863 = vadd.f32 %v1308, %v1847
      %v1864 = vadd.f32 %v1309, %v1848
      %v1865 = vadd.f32 %v1310, %v1849
      %v1866 = vadd.f32 %v1311, %v1850
      %v1867 = vadd.f32 %v1312, %v1851
      %v1868 = vadd.f32 %v1313, %v1852
      %v1869 = vadd.f32 %v1314, %v1853
      %v1870 = vadd.f32 %v1315, %v1854
      %v1871 = vadd.f32 %v1316, %v1855
      %v1872 = vadd.f32 %v1317, %v1856
      %v1873 = vadd.f32 %v1318, %v1857
      %v1874 = vadd.f32 %v1319, %v1858
      %v1875 = vadd.f32 %v1320, %v1859
      %v1876 = vadd.f32 %v1321, %v1860
      %v1877 = vadd.f32 %v1322, %v1861
      %v1878 = vld [vmem:[%s251] sm:$0xe]
      %s1879 = scalar_lea.vmem %s1, 4
      %v1880 = vld [vmem:[%s1879] sm:$0x3]
      %v1881 = vld [vmem:[%s251 + $0x8] sm:$0xe]
      %s1882 = scalar_lea.vmem %s1, 10
      %v1883 = vld [vmem:[%s1882] sm:$0x3]
      %v1885 = vunpack.c.l.b16 %v1881
      %v1886 = vpack.c.b16 %v820, %v1885
      %vm1887 = vcmask 1046528
      %v1888 = vrot.slane %v1886, 1
      %v1889 = vrot.slane %v837, 1
      %v1890 = vsel %vm1887, %v1888, %v1889
      %v1891 = vrot.slane %v838, 1
      %v1892 = vsel %vm1887, %v1889, %v1891
      %v1893 = vrot.slane %v839, 1
      %v1894 = vsel %vm1887, %v1891, %v1893
      %v1895 = vrot.slane %v840, 1
      %v1896 = vsel %vm1887, %v1893, %v1895
      %v1897 = vrot.slane %v841, 1
      %v1898 = vsel %vm1887, %v1895, %v1897
      %v1899 = vrot.slane %v842, 1
      %v1900 = vsel %vm1887, %v1897, %v1899
      %v1901 = vrot.slane %v843, 1
      %v1902 = vsel %vm1887, %v1899, %v1901
      %v1903 = vrot.slane %v844, 1
      %v1904 = vsel %vm1887, %v1901, %v1903
      %v1906 = vsel %vm641, %v1890, 0
      %v1909 = vsel %vm641, %v1892, 0
      %v1912 = vsel %vm641, %v1894, 0
      %v1915 = vsel %vm641, %v1896, 0
      %v1918 = vsel %vm641, %v1898, 0
      %v1921 = vsel %vm641, %v1900, 0
      %v1924 = vsel %vm641, %v1902, 0
      %v1927 = vsel %vm641, %v1904, 0
      %v1930 = vsel %vm666, %v1883, 0
      %1932 = vmatprep.subr.bf16.mxu0 0
      %1933 = vmatpush1.bf16.msra.mxu0 %v1930
      %1934 = vmatprep.subr.bf16.mxu0 0
      %1935 = vmatpush1.bf16.msra.mxu0 0
      %1936 = vmatprep.subr.bf16.mxu0 0
      %1937 = vmatpush1.bf16.msra.mxu0 0
      %1938 = vmatprep.subr.bf16.mxu0 0
      %1939 = vmatpush1.bf16.msra.mxu0 0
      %1940 = vmatprep.subr.bf16.mxu0 0
      %1941 = vmatpush1.bf16.msra.mxu0 0
      %1942 = vmatprep.subr.bf16.mxu0 0
      %1943 = vmatpush1.bf16.msra.mxu0 0
      %1944 = vmatprep.subr.bf16.mxu0 0
      %1945 = vmatpush1.bf16.msra.mxu0 0
      %1946 = vmatprep.subr.bf16.mxu0 0
      %1947 = vmatpush1.bf16.msra.mxu0 0
      %1948 = vmatprep.subr.bf16.mxu0 0
      %1949 = vmatpush1.bf16.msra.mxu0 0
      %1950 = vmatprep.subr.bf16.mxu0 0
      %1951 = vmatpush1.bf16.msra.mxu0 0
      %1952 = vmatprep.subr.bf16.mxu0 0
      %1953 = vmatpush1.bf16.msra.mxu0 0
      %1954 = vmatprep.subr.bf16.mxu0 0
      %1955 = vmatpush1.bf16.msra.mxu0 0
      %1956 = vmatprep.subr.bf16.mxu0 0
      %1957 = vmatpush1.bf16.msra.mxu0 0
      %1958 = vmatprep.subr.bf16.mxu0 0
      %1959 = vmatpush1.bf16.msra.mxu0 0
      %1960 = vmatprep.subr.bf16.mxu0 0
      %1961 = vmatpush1.bf16.msra.mxu0 0
      %1962 = vmatprep.subr.bf16.mxu0 0
      %1963 = vmatpush1.bf16.msra.mxu0 0
      %1964 = vmatprep.mubr.bf16.mxu0 0
      %1965 = vmatmul.mubr.bf16.gmra.mrb[0].mxu0 %v1906
      %v1966 = vpop.f32.mrb[0].mxu0
      %v1967 = vadd.f32 0.0, %v1966
      %v1968 = vpop.f32.mrb[0].mxu0
      %v1969 = vpop.f32.mrb[0].mxu0
      %v1970 = vadd.f32 0.0, %v1969
      %v1971 = vpop.f32.mrb[0].mxu0
      %1972 = vmatprep.mubr.bf16.mxu0 0
      %1973 = vmatmul.mubr.bf16.gmra.mrb[0].mxu0 %v1909
      %v1974 = vpop.f32.mrb[0].mxu0
      %v1975 = vadd.f32 0.0, %v1974
      %v1976 = vpop.f32.mrb[0].mxu0
      %v1977 = vpop.f32.mrb[0].mxu0
      %v1978 = vadd.f32 0.0, %v1977
      %v1979 = vpop.f32.mrb[0].mxu0
      %1980 = vmatprep.mubr.bf16.mxu0 0
      %1981 = vmatmul.mubr.bf16.gmra.mrb[0].mxu0 %v1912
      %v1982 = vpop.f32.mrb[0].mxu0
      %v1983 = vadd.f32 0.0, %v1982
      %v1984 = vpop.f32.mrb[0].mxu0
      %v1985 = vpop.f32.mrb[0].mxu0
      %v1986 = vadd.f32 0.0, %v1985
      %v1987 = vpop.f32.mrb[0].mxu0
      %1988 = vmatprep.mubr.bf16.mxu0 0
      %1989 = vmatmul.mubr.bf16.gmra.mrb[0].mxu0 %v1915
      %v1990 = vpop.f32.mrb[0].mxu0
      %v1991 = vadd.f32 0.0, %v1990
      %v1992 = vpop.f32.mrb[0].mxu0
      %v1993 = vpop.f32.mrb[0].mxu0
      %v1994 = vadd.f32 0.0, %v1993
      %v1995 = vpop.f32.mrb[0].mxu0
      %1996 = vmatprep.mubr.bf16.mxu0 0
      %1997 = vmatmul.mubr.bf16.gmra.mrb[0].mxu0 %v1918
      %v1998 = vpop.f32.mrb[0].mxu0
      %v1999 = vadd.f32 0.0, %v1998
      %v2000 = vpop.f32.mrb[0].mxu0
      %v2001 = vpop.f32.mrb[0].mxu0
      %v2002 = vadd.f32 0.0, %v2001
      %v2003 = vpop.f32.mrb[0].mxu0
      %2004 = vmatprep.mubr.bf16.mxu0 0
      %2005 = vmatmul.mubr.bf16.gmra.mrb[0].mxu0 %v1921
      %v2006 = vpop.f32.mrb[0].mxu0
      %v2007 = vadd.f32 0.0, %v2006
      %v2008 = vpop.f32.mrb[0].mxu0
      %v2009 = vpop.f32.mrb[0].mxu0
      %v2010 = vadd.f32 0.0, %v2009
      %v2011 = vpop.f32.mrb[0].mxu0
      %2012 = vmatprep.mubr.bf16.mxu0 0
      %2013 = vmatmul.mubr.bf16.gmra.mrb[0].mxu0 %v1924
      %v2014 = vpop.f32.mrb[0].mxu0
      %v2015 = vadd.f32 0.0, %v2014
      %v2016 = vpop.f32.mrb[0].mxu0
      %v2017 = vpop.f32.mrb[0].mxu0
      %v2018 = vadd.f32 0.0, %v2017
      %v2019 = vpop.f32.mrb[0].mxu0
      %2020 = vmatprep.mubr.bf16.mxu0 0
      %2021 = vmatmul.mubr.bf16.gmra.mrb[0].mxu0 %v1927
      %v2022 = vpop.f32.mrb[0].mxu0
      %v2023 = vadd.f32 0.0, %v2022
      %v2024 = vpop.f32.mrb[0].mxu0
      %v2025 = vpop.f32.mrb[0].mxu0
      %v2026 = vadd.f32 0.0, %v2025
      %v2027 = vpop.f32.mrb[0].mxu0
      %2028 = vdwg.mxu0
      %v2030 = vunpack.c.l.b16 %v1878
      %v2031 = vpack.c.b16 %v547, %v2030
      %v2032 = vrot.slane %v2031, 1
      %v2033 = vrot.slane %v564, 1
      %v2034 = vsel %vm1887, %v2032, %v2033
      %v2035 = vrot.slane %v565, 1
      %v2036 = vsel %vm1887, %v2033, %v2035
      %v2037 = vrot.slane %v566, 1
      %v2038 = vsel %vm1887, %v2035, %v2037
      %v2039 = vrot.slane %v567, 1
      %v2040 = vsel %vm1887, %v2037, %v2039
      %v2041 = vrot.slane %v568, 1
      %v2042 = vsel %vm1887, %v2039, %v2041
      %v2043 = vrot.slane %v569, 1
      %v2044 = vsel %vm1887, %v2041, %v2043
      %v2045 = vrot.slane %v570, 1
      %v2046 = vsel %vm1887, %v2043, %v2045
      %v2047 = vrot.slane %v571, 1
      %v2048 = vsel %vm1887, %v2045, %v2047
      %v2050 = vsel %vm641, %v2034, 0
      %v2053 = vsel %vm641, %v2036, 0
      %v2056 = vsel %vm641, %v2038, 0
      %v2059 = vsel %vm641, %v2040, 0
      %v2062 = vsel %vm641, %v2042, 0
      %v2065 = vsel %vm641, %v2044, 0
      %v2068 = vsel %vm641, %v2046, 0
      %v2071 = vsel %vm641, %v2048, 0
      %v2074 = vsel %vm666, %v1880, 0
      %2076 = vmatprep.subr.bf16.mxu0 0
      %2077 = vmatpush1.bf16.msra.mxu0 %v2074
      %2078 = vmatprep.subr.bf16.mxu0 0
      %2079 = vmatpush1.bf16.msra.mxu0 0
      %2080 = vmatprep.subr.bf16.mxu0 0
      %2081 = vmatpush1.bf16.msra.mxu0 0
      %2082 = vmatprep.subr.bf16.mxu0 0
      %2083 = vmatpush1.bf16.msra.mxu0 0
      %2084 = vmatprep.subr.bf16.mxu0 0
      %2085 = vmatpush1.bf16.msra.mxu0 0
      %2086 = vmatprep.subr.bf16.mxu0 0
      %2087 = vmatpush1.bf16.msra.mxu0 0
      %2088 = vmatprep.subr.bf16.mxu0 0
      %2089 = vmatpush1.bf16.msra.mxu0 0
      %2090 = vmatprep.subr.bf16.mxu0 0
      %2091 = vmatpush1.bf16.msra.mxu0 0
      %2092 = vmatprep.subr.bf16.mxu0 0
      %2093 = vmatpush1.bf16.msra.mxu0 0
      %2094 = vmatprep.subr.bf16.mxu0 0
      %2095 = vmatpush1.bf16.msra.mxu0 0
      %2096 = vmatprep.subr.bf16.mxu0 0
      %2097 = vmatpush1.bf16.msra.mxu0 0
      %2098 = vmatprep.subr.bf16.mxu0 0
      %2099 = vmatpush1.bf16.msra.mxu0 0
      %2100 = vmatprep.subr.bf16.mxu0 0
      %2101 = vmatpush1.bf16.msra.mxu0 0
      %2102 = vmatprep.subr.bf16.mxu0 0
      %2103 = vmatpush1.bf16.msra.mxu0 0
      %2104 = vmatprep.subr.bf16.mxu0 0
      %2105 = vmatpush1.bf16.msra.mxu0 0
      %2106 = vmatprep.subr.bf16.mxu0 0
      %2107 = vmatpush1.bf16.msra.mxu0 0
      %2108 = vmatprep.mubr.bf16.mxu0 0
      %2109 = vmatmul.mubr.bf16.gmra.mrb[0].mxu0 %v2050
      %v2110 = vpop.f32.mrb[0].mxu0
      %v2111 = vadd.f32 %v1967, %v2110
      %v2112 = vpop.f32.mrb[0].mxu0
      %v2113 = vpop.f32.mrb[0].mxu0
      %v2114 = vadd.f32 %v1970, %v2113
      %v2115 = vpop.f32.mrb[0].mxu0
      %2116 = vmatprep.mubr.bf16.mxu0 0
      %2117 = vmatmul.mubr.bf16.gmra.mrb[0].mxu0 %v2053
      %v2118 = vpop.f32.mrb[0].mxu0
      %v2119 = vadd.f32 %v1975, %v2118
      %v2120 = vpop.f32.mrb[0].mxu0
      %v2121 = vpop.f32.mrb[0].mxu0
      %v2122 = vadd.f32 %v1978, %v2121
      %v2123 = vpop.f32.mrb[0].mxu0
      %2124 = vmatprep.mubr.bf16.mxu0 0
      %2125 = vmatmul.mubr.bf16.gmra.mrb[0].mxu0 %v2056
      %v2126 = vpop.f32.mrb[0].mxu0
      %v2127 = vadd.f32 %v1983, %v2126
      %v2128 = vpop.f32.mrb[0].mxu0
      %v2129 = vpop.f32.mrb[0].mxu0
      %v2130 = vadd.f32 %v1986, %v2129
      %v2131 = vpop.f32.mrb[0].mxu0
      %2132 = vmatprep.mubr.bf16.mxu0 0
      %2133 = vmatmul.mubr.bf16.gmra.mrb[0].mxu0 %v2059
      %v2134 = vpop.f32.mrb[0].mxu0
      %v2135 = vadd.f32 %v1991, %v2134
      %v2136 = vpop.f32.mrb[0].mxu0
      %v2137 = vpop.f32.mrb[0].mxu0
      %v2138 = vadd.f32 %v1994, %v2137
      %v2139 = vpop.f32.mrb[0].mxu0
      %2140 = vmatprep.mubr.bf16.mxu0 0
      %2141 = vmatmul.mubr.bf16.gmra.mrb[0].mxu0 %v2062
      %v2142 = vpop.f32.mrb[0].mxu0
      %v2143 = vadd.f32 %v1999, %v2142
      %v2144 = vpop.f32.mrb[0].mxu0
      %v2145 = vpop.f32.mrb[0].mxu0
      %v2146 = vadd.f32 %v2002, %v2145
      %v2147 = vpop.f32.mrb[0].mxu0
      %2148 = vmatprep.mubr.bf16.mxu0 0
      %2149 = vmatmul.mubr.bf16.gmra.mrb[0].mxu0 %v2065
      %v2150 = vpop.f32.mrb[0].mxu0
      %v2151 = vadd.f32 %v2007, %v2150
      %v2152 = vpop.f32.mrb[0].mxu0
      %v2153 = vpop.f32.mrb[0].mxu0
      %v2154 = vadd.f32 %v2010, %v2153
      %v2155 = vpop.f32.mrb[0].mxu0
      %2156 = vmatprep.mubr.bf16.mxu0 0
      %2157 = vmatmul.mubr.bf16.gmra.mrb[0].mxu0 %v2068
      %v2158 = vpop.f32.mrb[0].mxu0
      %v2159 = vadd.f32 %v2015, %v2158
      %v2160 = vpop.f32.mrb[0].mxu0
      %v2161 = vpop.f32.mrb[0].mxu0
      %v2162 = vadd.f32 %v2018, %v2161
      %v2163 = vpop.f32.mrb[0].mxu0
      %2164 = vmatprep.mubr.bf16.mxu0 0
      %2165 = vmatmul.mubr.bf16.gmra.mrb[0].mxu0 %v2071
      %v2166 = vpop.f32.mrb[0].mxu0
      %v2167 = vadd.f32 %v2023, %v2166
      %v2168 = vpop.f32.mrb[0].mxu0
      %v2169 = vpop.f32.mrb[0].mxu0
      %v2170 = vadd.f32 %v2026, %v2169
      %v2171 = vpop.f32.mrb[0].mxu0
      %2172 = vdwg.mxu0
      %v2173 = vld [vmem:[%s251 + $0x10] sm:$0xe]
      %s2174 = scalar_lea.vmem %s1, 16
      %v2175 = vld [vmem:[%s2174] sm:$0x3]
      %v2177 = vunpack.c.l.b16 %v2173
      %v2178 = vpack.c.b16 %v1090, %v2177
      %v2179 = vrot.slane %v2178, 1
      %v2180 = vrot.slane %v1107, 1
      %v2181 = vsel %vm1887, %v2179, %v2180
      %v2182 = vrot.slane %v1108, 1
      %v2183 = vsel %vm1887, %v2180, %v2182
      %v2184 = vrot.slane %v1109, 1
      %v2185 = vsel %vm1887, %v2182, %v2184
      %v2186 = vrot.slane %v1110, 1
      %v2187 = vsel %vm1887, %v2184, %v2186
      %v2188 = vrot.slane %v1111, 1
      %v2189 = vsel %vm1887, %v2186, %v2188
      %v2190 = vrot.slane %v1112, 1
      %v2191 = vsel %vm1887, %v2188, %v2190
      %v2192 = vrot.slane %v1113, 1
      %v2193 = vsel %vm1887, %v2190, %v2192
      %v2194 = vrot.slane %v1114, 1
      %v2195 = vsel %vm1887, %v2192, %v2194
      %v2197 = vsel %vm641, %v2181, 0
      %v2200 = vsel %vm641, %v2183, 0
      %v2203 = vsel %vm641, %v2185, 0
      %v2206 = vsel %vm641, %v2187, 0
      %v2209 = vsel %vm641, %v2189, 0
      %v2212 = vsel %vm641, %v2191, 0
      %v2215 = vsel %vm641, %v2193, 0
      %v2218 = vsel %vm641, %v2195, 0
      %v2221 = vsel %vm666, %v2175, 0
      %2223 = vmatprep.subr.bf16.mxu0 0
      %2224 = vmatpush1.bf16.msra.mxu0 %v2221
      %2225 = vmatprep.subr.bf16.mxu0 0
      %2226 = vmatpush1.bf16.msra.mxu0 0
      %2227 = vmatprep.subr.bf16.mxu0 0
      %2228 = vmatpush1.bf16.msra.mxu0 0
      %2229 = vmatprep.subr.bf16.mxu0 0
      %2230 = vmatpush1.bf16.msra.mxu0 0
      %2231 = vmatprep.subr.bf16.mxu0 0
      %2232 = vmatpush1.bf16.msra.mxu0 0
      %2233 = vmatprep.subr.bf16.mxu0 0
      %2234 = vmatpush1.bf16.msra.mxu0 0
      %2235 = vmatprep.subr.bf16.mxu0 0
      %2236 = vmatpush1.bf16.msra.mxu0 0
      %2237 = vmatprep.subr.bf16.mxu0 0
      %2238 = vmatpush1.bf16.msra.mxu0 0
      %2239 = vmatprep.subr.bf16.mxu0 0
      %2240 = vmatpush1.bf16.msra.mxu0 0
      %2241 = vmatprep.subr.bf16.mxu0 0
      %2242 = vmatpush1.bf16.msra.mxu0 0
      %2243 = vmatprep.subr.bf16.mxu0 0
      %2244 = vmatpush1.bf16.msra.mxu0 0
      %2245 = vmatprep.subr.bf16.mxu0 0
      %2246 = vmatpush1.bf16.msra.mxu0 0
      %2247 = vmatprep.subr.bf16.mxu0 0
      %2248 = vmatpush1.bf16.msra.mxu0 0
      %2249 = vmatprep.subr.bf16.mxu0 0
      %2250 = vmatpush1.bf16.msra.mxu0 0
      %2251 = vmatprep.subr.bf16.mxu0 0
      %2252 = vmatpush1.bf16.msra.mxu0 0
      %2253 = vmatprep.subr.bf16.mxu0 0
      %2254 = vmatpush1.bf16.msra.mxu0 0
      %2255 = vmatprep.mubr.bf16.mxu0 0
      %2256 = vmatmul.mubr.bf16.gmra.mrb[0].mxu0 %v2197
      %v2257 = vpop.f32.mrb[0].mxu0
      %v2258 = vadd.f32 0.0, %v2257
      %v2259 = vpop.f32.mrb[0].mxu0
      %v2260 = vpop.f32.mrb[0].mxu0
      %v2261 = vadd.f32 0.0, %v2260
      %v2262 = vpop.f32.mrb[0].mxu0
      %2263 = vmatprep.mubr.bf16.mxu0 0
      %2264 = vmatmul.mubr.bf16.gmra.mrb[0].mxu0 %v2200
      %v2265 = vpop.f32.mrb[0].mxu0
      %v2266 = vadd.f32 0.0, %v2265
      %v2267 = vpop.f32.mrb[0].mxu0
      %v2268 = vpop.f32.mrb[0].mxu0
      %v2269 = vadd.f32 0.0, %v2268
      %v2270 = vpop.f32.mrb[0].mxu0
      %2271 = vmatprep.mubr.bf16.mxu0 0
      %2272 = vmatmul.mubr.bf16.gmra.mrb[0].mxu0 %v2203
      %v2273 = vpop.f32.mrb[0].mxu0
      %v2274 = vadd.f32 0.0, %v2273
      %v2275 = vpop.f32.mrb[0].mxu0
      %v2276 = vpop.f32.mrb[0].mxu0
      %v2277 = vadd.f32 0.0, %v2276
      %v2278 = vpop.f32.mrb[0].mxu0
      %2279 = vmatprep.mubr.bf16.mxu0 0
      %2280 = vmatmul.mubr.bf16.gmra.mrb[0].mxu0 %v2206
      %v2281 = vpop.f32.mrb[0].mxu0
      %v2282 = vadd.f32 0.0, %v2281
      %v2283 = vpop.f32.mrb[0].mxu0
      %v2284 = vpop.f32.mrb[0].mxu0
      %v2285 = vadd.f32 0.0, %v2284
      %v2286 = vpop.f32.mrb[0].mxu0
      %2287 = vmatprep.mubr.bf16.mxu0 0
      %2288 = vmatmul.mubr.bf16.gmra.mrb[0].mxu0 %v2209
      %v2289 = vpop.f32.mrb[0].mxu0
      %v2290 = vadd.f32 0.0, %v2289
      %v2291 = vpop.f32.mrb[0].mxu0
      %v2292 = vpop.f32.mrb[0].mxu0
      %v2293 = vadd.f32 0.0, %v2292
      %v2294 = vpop.f32.mrb[0].mxu0
      %2295 = vmatprep.mubr.bf16.mxu0 0
      %2296 = vmatmul.mubr.bf16.gmra.mrb[0].mxu0 %v2212
      %v2297 = vpop.f32.mrb[0].mxu0
      %v2298 = vadd.f32 0.0, %v2297
      %v2299 = vpop.f32.mrb[0].mxu0
      %v2300 = vpop.f32.mrb[0].mxu0
      %v2301 = vadd.f32 0.0, %v2300
      %v2302 = vpop.f32.mrb[0].mxu0
      %2303 = vmatprep.mubr.bf16.mxu0 0
      %2304 = vmatmul.mubr.bf16.gmra.mrb[0].mxu0 %v2215
      %v2305 = vpop.f32.mrb[0].mxu0
      %v2306 = vadd.f32 0.0, %v2305
      %v2307 = vpop.f32.mrb[0].mxu0
      %v2308 = vpop.f32.mrb[0].mxu0
      %v2309 = vadd.f32 0.0, %v2308
      %v2310 = vpop.f32.mrb[0].mxu0
      %2311 = vmatprep.mubr.bf16.mxu0 0
      %2312 = vmatmul.mubr.bf16.gmra.mrb[0].mxu0 %v2218
      %v2313 = vpop.f32.mrb[0].mxu0
      %v2314 = vadd.f32 0.0, %v2313
      %v2315 = vpop.f32.mrb[0].mxu0
      %v2316 = vpop.f32.mrb[0].mxu0
      %v2317 = vadd.f32 0.0, %v2316
      %v2318 = vpop.f32.mrb[0].mxu0
      %2319 = vdwg.mxu0
      %v2320 = vadd.f32 %v2111, %v2258
      %v2321 = vadd.f32 %v2114, %v2261
      %v2322 = vadd.f32 %v2119, %v2266
      %v2323 = vadd.f32 %v2122, %v2269
      %v2324 = vadd.f32 %v2127, %v2274
      %v2325 = vadd.f32 %v2130, %v2277
      %v2326 = vadd.f32 %v2135, %v2282
      %v2327 = vadd.f32 %v2138, %v2285
      %v2328 = vadd.f32 %v2143, %v2290
      %v2329 = vadd.f32 %v2146, %v2293
      %v2330 = vadd.f32 %v2151, %v2298
      %v2331 = vadd.f32 %v2154, %v2301
      %v2332 = vadd.f32 %v2159, %v2306
      %v2333 = vadd.f32 %v2162, %v2309
      %v2334 = vadd.f32 %v2167, %v2314
      %v2335 = vadd.f32 %v2170, %v2317
      %v2336 = vsel %vm487, 1, 0
      %v2337 = vsel %vm488, 1, 0
      %v2338 = vsel %vm489, 1, 0
      %v2339 = vsel %vm490, 1, 0
      %v2340 = vsel %vm491, 1, 0
      %v2341 = vsel %vm492, 1, 0
      %v2342 = vsel %vm493, 1, 0
      %v2343 = vsel %vm494, 1, 0
      %v2344 = vsel %vm495, 1, 0
      %v2345 = vsel %vm496, 1, 0
      %v2346 = vsel %vm497, 1, 0
      %v2347 = vsel %vm498, 1, 0
      %v2348 = vsel %vm499, 1, 0
      %v2349 = vsel %vm500, 1, 0
      %v2350 = vsel %vm501, 1, 0
      %v2351 = vsel %vm502, 1, 0
      %vm2352 = vcmp.eq.s32.totalorder %v2336, 1
      %vm2353 = vcmp.eq.s32.totalorder %v2337, 1
      %vm2354 = vcmp.eq.s32.totalorder %v2338, 1
      %vm2355 = vcmp.eq.s32.totalorder %v2339, 1
      %vm2356 = vcmp.eq.s32.totalorder %v2340, 1
      %vm2357 = vcmp.eq.s32.totalorder %v2341, 1
      %vm2358 = vcmp.eq.s32.totalorder %v2342, 1
      %vm2359 = vcmp.eq.s32.totalorder %v2343, 1
      %vm2360 = vcmp.eq.s32.totalorder %v2344, 1
      %vm2361 = vcmp.eq.s32.totalorder %v2345, 1
      %vm2362 = vcmp.eq.s32.totalorder %v2346, 1
      %vm2363 = vcmp.eq.s32.totalorder %v2347, 1
      %vm2364 = vcmp.eq.s32.totalorder %v2348, 1
      %vm2365 = vcmp.eq.s32.totalorder %v2349, 1
      %vm2366 = vcmp.eq.s32.totalorder %v2350, 1
      %vm2367 = vcmp.eq.s32.totalorder %v2351, 1
      %v2368 = vsel %vm2352, %v2320, 0.0
      %v2369 = vsel %vm2353, %v2321, 0.0
      %v2370 = vsel %vm2354, %v2322, 0.0
      %v2371 = vsel %vm2355, %v2323, 0.0
      %v2372 = vsel %vm2356, %v2324, 0.0
      %v2373 = vsel %vm2357, %v2325, 0.0
      %v2374 = vsel %vm2358, %v2326, 0.0
      %v2375 = vsel %vm2359, %v2327, 0.0
      %v2376 = vsel %vm2360, %v2328, 0.0
      %v2377 = vsel %vm2361, %v2329, 0.0
      %v2378 = vsel %vm2362, %v2330, 0.0
      %v2379 = vsel %vm2363, %v2331, 0.0
      %v2380 = vsel %vm2364, %v2332, 0.0
      %v2381 = vsel %vm2365, %v2333, 0.0
      %v2382 = vsel %vm2366, %v2334, 0.0
      %v2383 = vsel %vm2367, %v2335, 0.0
      %v2384 = vadd.f32 %v1862, %v2368
      %v2385 = vadd.f32 %v1863, %v2369
      %v2386 = vadd.f32 %v1864, %v2370
      %v2387 = vadd.f32 %v1865, %v2371
      %v2388 = vadd.f32 %v1866, %v2372
      %v2389 = vadd.f32 %v1867, %v2373
      %v2390 = vadd.f32 %v1868, %v2374
      %v2391 = vadd.f32 %v1869, %v2375
      %v2392 = vadd.f32 %v1870, %v2376
      %v2393 = vadd.f32 %v1871, %v2377
      %v2394 = vadd.f32 %v1872, %v2378
      %v2395 = vadd.f32 %v1873, %v2379
      %v2396 = vadd.f32 %v1874, %v2380
      %v2397 = vadd.f32 %v1875, %v2381
      %v2398 = vadd.f32 %v1876, %v2382
      %v2399 = vadd.f32 %v1877, %v2383
      %v2400 = vmax.f32 %v2384, 0.0
      %v2401 = vmax.f32 %v2385, 0.0
      %v2402 = vmax.f32 %v2386, 0.0
      %v2403 = vmax.f32 %v2387, 0.0
      %v2404 = vmax.f32 %v2388, 0.0
      %v2405 = vmax.f32 %v2389, 0.0
      %v2406 = vmax.f32 %v2390, 0.0
      %v2407 = vmax.f32 %v2391, 0.0
      %v2408 = vmax.f32 %v2392, 0.0
      %v2409 = vmax.f32 %v2393, 0.0
      %v2410 = vmax.f32 %v2394, 0.0
      %v2411 = vmax.f32 %v2395, 0.0
      %v2412 = vmax.f32 %v2396, 0.0
      %v2413 = vmax.f32 %v2397, 0.0
      %v2414 = vmax.f32 %v2398, 0.0
      %v2415 = vmax.f32 %v2399, 0.0
      %v2416 = vpack.c.bf16 %v2401, %v2400
      %v2417 = vpack.c.bf16 %v2403, %v2402
      %v2418 = vpack.c.bf16 %v2405, %v2404
      %v2419 = vpack.c.bf16 %v2407, %v2406
      %v2420 = vpack.c.bf16 %v2409, %v2408
      %v2421 = vpack.c.bf16 %v2411, %v2410
      %v2422 = vpack.c.bf16 %v2413, %v2412
      %v2423 = vpack.c.bf16 %v2415, %v2414
      %v2424 = vld [vmem:[%s3] sm:$0xf]
      %v2425 = vld [vmem:[%s3 + $0x4] sm:$0xf]
      %v2426 = vld [vmem:[%s3 + $0x8] sm:$0xf]
      %v2427 = vld [vmem:[%s3 + $0xc] sm:$0xf]
      %v2428 = vld [vmem:[%s4] sm:$0x1]
      %v2430 = vlaneseq
      %v2431 = vshrl.u32 %v2430, 7
      %v2432 = vsub.s32 0, %v2431
      %v2433 = vrot.slane %v2428, %v2432
      %v2439 = vunpack.c.l.b16 %v2424
      %v2440 = vunpack.c.l.b16 %v2425
      %v2441 = vunpack.c.l.b16 %v2426
      %v2442 = vunpack.c.l.b16 %v2427
      %v2443 = vpack.c.b16 %v2440, %v2439
      %v2444 = vpack.c.b16 %v2442, %v2441
      %vm2447 = vcmask 261120
      %v2449 = vsel %vm2447, %v2416, 0
      %v2452 = vsel %vm2447, %v2417, 0
      %v2455 = vsel %vm2447, %v2418, 0
      %v2458 = vsel %vm2447, %v2419, 0
      %v2461 = vsel %vm2447, %v2420, 0
      %v2464 = vsel %vm2447, %v2421, 0
      %v2467 = vsel %vm2447, %v2422, 0
      %v2470 = vsel %vm2447, %v2423, 0
      %2472 = vmatprep.subr.bf16.mxu0 0
      %2473 = vmatpush1.bf16.msra.mxu0 %v2443
      %2474 = vmatprep.subr.bf16.mxu0 0
      %2475 = vmatpush1.bf16.msra.mxu0 %v2444
      %2476 = vmatprep.subr.bf16.mxu0 0
      %2477 = vmatpush1.bf16.msra.mxu0 0
      %2478 = vmatprep.subr.bf16.mxu0 0
      %2479 = vmatpush1.bf16.msra.mxu0 0
      %2480 = vmatprep.subr.bf16.mxu0 0
      %2481 = vmatpush1.bf16.msra.mxu0 0
      %2482 = vmatprep.subr.bf16.mxu0 0
      %2483 = vmatpush1.bf16.msra.mxu0 0
      %2484 = vmatprep.subr.bf16.mxu0 0
      %2485 = vmatpush1.bf16.msra.mxu0 0
      %2486 = vmatprep.subr.bf16.mxu0 0
      %2487 = vmatpush1.bf16.msra.mxu0 0
      %2488 = vmatprep.subr.bf16.mxu0 0
      %2489 = vmatpush1.bf16.msra.mxu0 0
      %2490 = vmatprep.subr.bf16.mxu0 0
      %2491 = vmatpush1.bf16.msra.mxu0 0
      %2492 = vmatprep.subr.bf16.mxu0 0
      %2493 = vmatpush1.bf16.msra.mxu0 0
      %2494 = vmatprep.subr.bf16.mxu0 0
      %2495 = vmatpush1.bf16.msra.mxu0 0
      %2496 = vmatprep.subr.bf16.mxu0 0
      %2497 = vmatpush1.bf16.msra.mxu0 0
      %2498 = vmatprep.subr.bf16.mxu0 0
      %2499 = vmatpush1.bf16.msra.mxu0 0
      %2500 = vmatprep.subr.bf16.mxu0 0
      %2501 = vmatpush1.bf16.msra.mxu0 0
      %2502 = vmatprep.subr.bf16.mxu0 0
      %2503 = vmatpush1.bf16.msra.mxu0 0
      %2504 = vmatprep.mubr.bf16.mxu0 0
      %2505 = vmatmul.mubr.bf16.gmra.mrb[0].mxu0 %v2449
      %v2506 = vpop.f32.mrb[0].mxu0
      %v2507 = vadd.f32 %v2433, %v2506
      %v2508 = vpop.f32.mrb[0].mxu0
      %v2509 = vpop.f32.mrb[0].mxu0
      %v2510 = vadd.f32 %v2433, %v2509
      %v2511 = vpop.f32.mrb[0].mxu0
      %2512 = vmatprep.mubr.bf16.mxu0 0
      %2513 = vmatmul.mubr.bf16.gmra.mrb[0].mxu0 %v2452
      %v2514 = vpop.f32.mrb[0].mxu0
      %v2515 = vadd.f32 %v2433, %v2514
      %v2516 = vpop.f32.mrb[0].mxu0
      %v2517 = vpop.f32.mrb[0].mxu0
      %v2518 = vadd.f32 %v2433, %v2517
      %v2519 = vpop.f32.mrb[0].mxu0
      %2520 = vmatprep.mubr.bf16.mxu0 0
      %2521 = vmatmul.mubr.bf16.gmra.mrb[0].mxu0 %v2455
      %v2522 = vpop.f32.mrb[0].mxu0
      %v2523 = vadd.f32 %v2433, %v2522
      %v2524 = vpop.f32.mrb[0].mxu0
      %v2525 = vpop.f32.mrb[0].mxu0
      %v2526 = vadd.f32 %v2433, %v2525
      %v2527 = vpop.f32.mrb[0].mxu0
      %2528 = vmatprep.mubr.bf16.mxu0 0
      %2529 = vmatmul.mubr.bf16.gmra.mrb[0].mxu0 %v2458
      %v2530 = vpop.f32.mrb[0].mxu0
      %v2531 = vadd.f32 %v2433, %v2530
      %v2532 = vpop.f32.mrb[0].mxu0
      %v2533 = vpop.f32.mrb[0].mxu0
      %v2534 = vadd.f32 %v2433, %v2533
      %v2535 = vpop.f32.mrb[0].mxu0
      %2536 = vmatprep.mubr.bf16.mxu0 0
      %2537 = vmatmul.mubr.bf16.gmra.mrb[0].mxu0 %v2461
      %v2538 = vpop.f32.mrb[0].mxu0
      %v2539 = vadd.f32 %v2433, %v2538
      %v2540 = vpop.f32.mrb[0].mxu0
      %v2541 = vpop.f32.mrb[0].mxu0
      %v2542 = vadd.f32 %v2433, %v2541
      %v2543 = vpop.f32.mrb[0].mxu0
      %2544 = vmatprep.mubr.bf16.mxu0 0
      %2545 = vmatmul.mubr.bf16.gmra.mrb[0].mxu0 %v2464
      %v2546 = vpop.f32.mrb[0].mxu0
      %v2547 = vadd.f32 %v2433, %v2546
      %v2548 = vpop.f32.mrb[0].mxu0
      %v2549 = vpop.f32.mrb[0].mxu0
      %v2550 = vadd.f32 %v2433, %v2549
      %v2551 = vpop.f32.mrb[0].mxu0
      %2552 = vmatprep.mubr.bf16.mxu0 0
      %2553 = vmatmul.mubr.bf16.gmra.mrb[0].mxu0 %v2467
      %v2554 = vpop.f32.mrb[0].mxu0
      %v2555 = vadd.f32 %v2433, %v2554
      %v2556 = vpop.f32.mrb[0].mxu0
      %v2557 = vpop.f32.mrb[0].mxu0
      %v2558 = vadd.f32 %v2433, %v2557
      %v2559 = vpop.f32.mrb[0].mxu0
      %2560 = vmatprep.mubr.bf16.mxu0 0
      %2561 = vmatmul.mubr.bf16.gmra.mrb[0].mxu0 %v2470
      %v2562 = vpop.f32.mrb[0].mxu0
      %v2563 = vadd.f32 %v2433, %v2562
      %v2564 = vpop.f32.mrb[0].mxu0
      %v2565 = vpop.f32.mrb[0].mxu0
      %v2566 = vadd.f32 %v2433, %v2565
      %v2567 = vpop.f32.mrb[0].mxu0
      %2568 = vdwg.mxu0
      %v2569 = vpack.c.bf16 %v2510, %v2507
      %v2570 = vpack.c.bf16 %v2518, %v2515
      %v2571 = vpack.c.bf16 %v2526, %v2523
      %v2572 = vpack.c.bf16 %v2534, %v2531
      %v2573 = vpack.c.bf16 %v2542, %v2539
      %v2574 = vpack.c.bf16 %v2550, %v2547
      %v2575 = vpack.c.bf16 %v2558, %v2555
      %v2576 = vpack.c.bf16 %v2566, %v2563
      %v2585 = vunpack.c.l.b16 %v2569
      %v2586 = vunpack.c.h.b16 %v2569
      %v2587 = vunpack.c.l.b16 %v2570
      %v2588 = vunpack.c.h.b16 %v2570
      %v2589 = vunpack.c.l.b16 %v2571
      %v2590 = vunpack.c.h.b16 %v2571
      %v2591 = vunpack.c.l.b16 %v2572
      %v2592 = vunpack.c.h.b16 %v2572
      %v2593 = vunpack.c.l.b16 %v2573
      %v2594 = vunpack.c.h.b16 %v2573
      %v2595 = vunpack.c.l.b16 %v2574
      %v2596 = vunpack.c.h.b16 %v2574
      %v2597 = vunpack.c.l.b16 %v2575
      %v2598 = vunpack.c.h.b16 %v2575
      %v2599 = vunpack.c.l.b16 %v2576
      %v2600 = vunpack.c.h.b16 %v2576
      %v2601 = vpack.c.b16 %v2585, %v2585
      %v2602 = vpack.c.b16 %v2586, %v2586
      %v2603 = vpack.c.b16 %v2587, %v2587
      %v2604 = vpack.c.b16 %v2588, %v2588
      %v2605 = vpack.c.b16 %v2589, %v2589
      %v2606 = vpack.c.b16 %v2590, %v2590
      %v2607 = vpack.c.b16 %v2591, %v2591
      %v2608 = vpack.c.b16 %v2592, %v2592
      %v2609 = vpack.c.b16 %v2593, %v2593
      %v2610 = vpack.c.b16 %v2594, %v2594
      %v2611 = vpack.c.b16 %v2595, %v2595
      %v2612 = vpack.c.b16 %v2596, %v2596
      %v2613 = vpack.c.b16 %v2597, %v2597
      %v2614 = vpack.c.b16 %v2598, %v2598
      %v2615 = vpack.c.b16 %v2599, %v2599
      %v2616 = vpack.c.b16 %v2600, %v2600
      %2633 = vst [vmem:[%s260] sm:$0xf] %v2601
      %2634 = vst [vmem:[%s260 + $0x4] sm:$0xf] %v2602
      %2635 = vst [vmem:[%s260 + $0x8] sm:$0xf] %v2603
      %2636 = vst [vmem:[%s260 + $0xc] sm:$0xf] %v2604
      %2637 = vst [vmem:[%s260 + $0x10] sm:$0xf] %v2605
      %2638 = vst [vmem:[%s260 + $0x14] sm:$0xf] %v2606
      %2639 = vst [vmem:[%s260 + $0x18] sm:$0xf] %v2607
      %2640 = vst [vmem:[%s260 + $0x1c] sm:$0xf] %v2608
      %2641 = vst [vmem:[%s260 + $0x20] sm:$0xf] %v2609
      %2642 = vst [vmem:[%s260 + $0x24] sm:$0xf] %v2610
      %2643 = vst [vmem:[%s260 + $0x28] sm:$0xf] %v2611
      %2644 = vst [vmem:[%s260 + $0x2c] sm:$0xf] %v2612
      %2645 = vst [vmem:[%s260 + $0x30] sm:$0xf] %v2613
      %2646 = vst [vmem:[%s260 + $0x34] sm:$0xf] %v2614
      %2647 = vst [vmem:[%s260 + $0x38] sm:$0xf] %v2615
      %2648 = vst [vmem:[%s260 + $0x3c] sm:$0xf] %v2616
      %p2649 = scmp.lt.s32.totalorder %s20, 1
      %s2650 = scalar_select %p2649, %s20, 1
      %p2651 = scmp.lt.s32.totalorder %s21, 1
      %s2652 = scalar_select %p2651, %s21, 1
      %s2653 = smul.addr %s2652, 16
      %s2654 = smul.addr %s2650, 32
      %s2655 = sadd.s32 %s2653, %s2654
      %s2656 = smul.addr %s2655, 4
      %s2657 = scalar_lea.vmem %s5, %s2656
      // Predicated region
      $region41: #{rpn_head_forward.1} parent=39 // pred_check
        %p2658 = pneg %p160
      $region42: #{rpn_head_forward.1} parent=39 // pred_check_branch
        %2660 = sbr.rel (%p2658) target = $region44
      $region43: #{rpn_head_forward.1} parent=39 // pred_region
        _
      $region44: #{rpn_head_forward.1} parent=39 // pred_fallthru
        _
    $region40: #{rpn_head_forward.1} parent=5 // pred_fallthru
      _
    %p2661 = scmp.le.s32.totalorder 2, %s11
    // Predicated region
    $region45: #{rpn_head_forward.1} parent=5 // pred_check
      %p2662 = pneg %p2661
    $region46: #{rpn_head_forward.1} parent=5 // pred_check_branch
      %2664 = sbr.rel (%p2662) target = $region48
    $region47: #{rpn_head_forward.1} parent=5 // pred_region
      %s2665 = ssub.s32 %s11, 2
      // Predicated region
      $region49: #{rpn_head_forward.1} parent=47 // pred_check
        %p2666 = pneg %p166
      $region50: #{rpn_head_forward.1} parent=47 // pred_check_branch
        %2668 = sbr.rel (%p2666) target = $region52
      $region51: #{rpn_head_forward.1} parent=47 // pred_region
        %p2669 = scmp.lt.s32.totalorder %s22, 1
        %s2670 = scalar_select %p2669, %s22, 1
        %p2671 = scmp.lt.s32.totalorder %s23, 1
        %s2672 = scalar_select %p2671, %s23, 1
        %s2673 = smul.addr %s2672, 16
        %s2674 = smul.addr %s2670, 32
        %s2675 = sadd.s32 %s2673, %s2674
        %s2676 = smul.addr %s2675, 4
        %s2677 = scalar_lea.vmem %s5, %s2676
      $region52: #{rpn_head_forward.1} parent=47 // pred_fallthru
        _
    $region48: #{rpn_head_forward.1} parent=5 // pred_fallthru
      _
  $region6: #{rpn_head_forward.1} parent=0 // loop_footer
    %s15 = sadd.s32 1, %s11
  $region7: #{rpn_head_forward.1} parent=0 // loop_footer_branch
    %10 = sbr.rel target = $region3
  $region8: #{rpn_head_forward.1} parent=0 // loop_exit
    _

</llo_original>
